<compile_context>
chip_gen: v7x
topology: tpu7x:2x2x1
jax: 0.10.0
libtpu: 0.0.40
codegen_flags: <defaults>
</compile_context>

<pallas_src>
import functools

import jax
import jax.numpy as jnp
from jax.experimental import pallas as pl
from jax.experimental.pallas import tpu as pltpu


def hybrid_kernel(xcol_ref, slab_ref, out_ref, gin_ref, *, seq_len, hidden, batch_pad):
    L, H, Bp = seq_len, hidden, batch_pad

    # Static, sublane-aligned views into the packed parameter slab (hoisted).
    w_in1 = slab_ref[0:8, :]                 # (8, 8H): conv folded into w_ih1 + bias row
    w_rec = slab_ref[8:8 + 2 * H, :]         # (2H, 8H): fused recurrent weights

    # Hoisted input path: conv + layer-1 input projection + b1/b2 for all L+1
    # wavefront steps as ONE matmul into VMEM scratch ((L+1)*Bp, 8H).
    gin_ref[...] = jnp.dot(xcol_ref[...], w_in1, preferred_element_type=jnp.float32)

    # Lane mask selecting the layer-1 half of the packed [.|.] state.
    l1_mask = jax.lax.broadcasted_iota(jnp.int32, (Bp, 2 * H), 1) < H

    c12 = jnp.zeros((Bp, 2 * H), jnp.float32)   # [c1 | c2]
    h12 = jnp.zeros((Bp, 2 * H), jnp.float32)   # [h1 | h2]

    # Software wavefront: iteration i computes layer-1 step i and layer-2 step
    # i-1 with ONE fused matmul + ONE sigmoid + ONE tanh.  Fully unrolled.
    for i in range(L + 1):
        gates = gin_ref[i * Bp:(i + 1) * Bp, :]
        if i > 0:
            gates = gates + jnp.dot(h12, w_rec, preferred_element_type=jnp.float32)
        sig = jax.nn.sigmoid(gates[:, :6 * H])   # [i1|i2 | f1|f2 | o1|o2]
        i12 = sig[:, :2 * H]
        f12 = sig[:, 2 * H:4 * H]
        o12 = sig[:, 4 * H:6 * H]
        g12 = jnp.tanh(gates[:, 6 * H:])         # [g1 | g2]
        if i == 0:
            # layer-2 has no step -1: keep its half of the state at zero
            # (h2 half then comes out zero automatically via tanh(0)).
            c12 = jnp.where(l1_mask, i12 * g12, 0.0)
        else:
            c12 = f12 * c12 + i12 * g12
        h12 = o12 * jnp.tanh(c12)
    # After i == L, h12[:, H:] is layer-2's hidden at the last timestep.

    # fc on the final layer-2 hidden state: VPU multiply + lane reduce
    # (an N=1 MXU matmul would pay a full drain for one output column).
    h2 = h12[:, H:]
    wfc = slab_ref[8 + 2 * H:8 + 2 * H + 1, :H]          # (1, H)
    bfc = slab_ref[8 + 2 * H:8 + 2 * H + 1, H:H + 1]     # (1, 1)
    out_ref[...] = jnp.sum(h2 * wfc, axis=-1, keepdims=True) + bfc


def _interleave_gates(a, b, H):
    """Map two (..., 4H) gate blocks in PyTorch order (i,f,g,o) to the fused
    kernel layout [a_i | b_i | a_f | b_f | a_o | b_o | a_g | b_g]."""
    blocks = []
    for k in (0, 1, 3, 2):      # i, f, o, g
        blocks.append(a[..., k * H:(k + 1) * H])
        blocks.append(b[..., k * H:(k + 1) * H])
    return jnp.concatenate(blocks, axis=-1)


def hybrid_forward(x, params, *, hidden):
    """x: (B, 1, L) float32 (PyTorch NCL). Returns (B, 1)."""
    B, cin, L = x.shape
    assert cin == 1
    H = hidden
    Bp = max(8, -(-B // 8) * 8)                  # pad batch/sublane dim to 8

    # ---- im2col for Conv1d(k=3, pad=1), time-major, batch padded, plus a
    #      ones column (bias folding) and zero-pad to K=8 (glue) ----
    xs = jnp.pad(x[:, 0, :].astype(jnp.float32), ((0, Bp - B), (0, 0)))   # (Bp, L)
    xpad = jnp.pad(xs, ((0, 0), (1, 1)))                                  # (Bp, L+2)
    xcol = jnp.stack([xpad[:, k:k + L] for k in range(3)], axis=-1)       # (Bp, L, 3)
    xcol = jnp.transpose(xcol, (1, 0, 2)).reshape(L * Bp, 3)              # (L*Bp, 3)
    # extra row-block for the final (layer-2-only) wavefront step
    xcol = jnp.concatenate([xcol, jnp.zeros((Bp, 3), jnp.float32)], axis=0)
    xcol_aug = jnp.concatenate(
        [xcol,
         jnp.ones(((L + 1) * Bp, 1), jnp.float32),
         jnp.zeros(((L + 1) * Bp, 4), jnp.float32)], axis=-1)             # ((L+1)*Bp, 8)

    # ---- one-time exact parameter folding / fusion (host side) ----
    # Input-path weights: conv folded into layer-1 input projection, biases on
    # the ones row, layer-2 bias broadcast via the same row.
    w_in_x = _interleave_gates(params["conv_w"] @ params["w_ih1"],
                               jnp.zeros((3, 4 * H), jnp.float32), H)      # (3, 8H)
    w_in_b = _interleave_gates(params["conv_b"] @ params["w_ih1"] + params["b1"],
                               params["b2"], H)                            # (1, 8H)
    w_in1 = jnp.concatenate([w_in_x, w_in_b,
                             jnp.zeros((4, 8 * H), jnp.float32)], axis=0)  # (8, 8H)

    # Fused recurrent weights consumed by packed h12 = [h1 | h2].
    w_rec = jnp.concatenate(
        [_interleave_gates(params["w_hh1"], params["w_ih2"], H),           # h1 rows
         _interleave_gates(jnp.zeros((H, 4 * H), jnp.float32), params["w_hh2"], H)],
        axis=0)                                                            # (2H, 8H)

    # fc packed into one padded row-block.
    fc_row = jnp.zeros((8, 8 * H), jnp.float32)
    fc_row = fc_row.at[0, :H].set(params["fc_w"][:, 0])
    fc_row = fc_row.at[0, H].set(params["fc_b"][0, 0])

    slab = jnp.concatenate([w_in1, w_rec, fc_row], axis=0)                 # (80, 8H)

    kern = functools.partial(hybrid_kernel, seq_len=L, hidden=H, batch_pad=Bp)
    vmem = pl.BlockSpec(memory_space=pltpu.MemorySpace.VMEM)

    out = pl.pallas_call(
        kern,
        out_shape=jax.ShapeDtypeStruct((Bp, 1), jnp.float32),
        in_specs=[vmem, vmem],
        out_specs=vmem,
        scratch_shapes=[pltpu.VMEM(((L + 1) * Bp, 8 * H), jnp.float32)],
    )(xcol_aug, slab)
    return out[:B]


def make_params(key, conv_filters, hidden):
    """Deterministic synthetic parameters, PyTorch-equivalent layout (transposed)."""
    F, H = conv_filters, hidden
    ks = jax.random.split(key, 10)
    u = lambda k, shape, s=0.2: jax.random.uniform(k, shape, jnp.float32, -s, s)
    return dict(
        conv_w=u(ks[0], (3, F)),          # == torch conv1.weight[:, 0, :].T
        conv_b=u(ks[1], (1, F)),
        w_ih1=u(ks[2], (F, 4 * H)),       # == weight_ih_l0.T  (gate order i,f,g,o)
        w_hh1=u(ks[3], (H, 4 * H)),       # == weight_hh_l0.T
        b1=u(ks[4], (1, 4 * H)),          # == (bias_ih_l0 + bias_hh_l0)
        w_ih2=u(ks[5], (H, 4 * H)),       # == weight_ih_l1.T
        w_hh2=u(ks[6], (H, 4 * H)),       # == weight_hh_l1.T
        b2=u(ks[7], (1, 4 * H)),
        fc_w=u(ks[8], (H, 1)),            # == fc.weight.T
        fc_b=u(ks[9], (1, 1)),
    )


def reference_forward(x, params, hidden):
    """Pure-JAX reference matching PyTorch semantics exactly (gate order i,f,g,o)."""
    B, _, L = x.shape
    H = hidden
    xs = x[:, 0, :]
    xpad = jnp.pad(xs, ((0, 0), (1, 1)))
    xcol = jnp.stack([xpad[:, k:k + L] for k in range(3)], axis=-1)        # (B, L, 3)
    conv = jnp.einsum("blk,kf->blf", xcol, params["conv_w"]) + params["conv_b"][0]

    def cell(x_t, h, c, w_ih, w_hh, b):
        g = x_t @ w_ih + h @ w_hh + b[0]
        i = jax.nn.sigmoid(g[:, :H])
        f = jax.nn.sigmoid(g[:, H:2 * H])
        gg = jnp.tanh(g[:, 2 * H:3 * H])
        o = jax.nn.sigmoid(g[:, 3 * H:])
        c = f * c + i * gg
        h = o * jnp.tanh(c)
        return h, c

    h1 = jnp.zeros((B, H), jnp.float32)
    c1 = jnp.zeros((B, H), jnp.float32)
    h2 = jnp.zeros((B, H), jnp.float32)
    c2 = jnp.zeros((B, H), jnp.float32)
    for t in range(L):
        h1, c1 = cell(conv[:, t, :], h1, c1, params["w_ih1"], params["w_hh1"], params["b1"])
        h2, c2 = cell(h1, h2, c2, params["w_ih2"], params["w_hh2"], params["b2"])
    return h2 @ params["fc_w"] + params["fc_b"][0]


if __name__ == "__main__":
    B, L = 2, 16
    conv_filters, hidden = 8, 32

    key = jax.random.PRNGKey(0)
    k_x, k_p = jax.random.split(key)
    x = jax.random.normal(k_x, (B, 1, L), dtype=jnp.float32)   # PyTorch NCL input
    params = make_params(k_p, conv_filters, hidden)

    out = hybrid_forward(x, params, hidden=hidden)
    out = jax.block_until_ready(out)

    ref = reference_forward(x, params, hidden)
    assert out.shape == (B, 1)
    assert jnp.allclose(out, ref, rtol=1e-4, atol=1e-4), (out, ref)

    print("KERNEL_OK")
</pallas_src>

<mosaic_0001>
module attributes {stable_mosaic.version = 11 : i64} {
  func.func @hybrid_kernel(%arg0: memref<136x8xf32, #tpu.memory_space<vmem>>, %arg1: memref<80x256xf32, #tpu.memory_space<vmem>>, %arg2: memref<8x1xf32, #tpu.memory_space<vmem>>, %arg3: memref<136x256xf32, #tpu.memory_space<vmem>>) attributes {dimension_semantics = [], scalar_prefetch = 0 : i64, scratch_operands = 1 : i64, tpu.core_type = #tpu.core_type<tc>} {
    %c0 = arith.constant 0 : index
    %c0_0 = arith.constant 0 : index
    %0 = vector.load %arg1[%c0, %c0_0] : memref<80x256xf32, #tpu.memory_space<vmem>>, vector<8x256xf32>
    %c8 = arith.constant 8 : index
    %c0_1 = arith.constant 0 : index
    %1 = vector.load %arg1[%c8, %c0_1] : memref<80x256xf32, #tpu.memory_space<vmem>>, vector<64x256xf32>
    %c0_2 = arith.constant 0 : index
    %c0_3 = arith.constant 0 : index
    %2 = vector.load %arg0[%c0_2, %c0_3] : memref<136x8xf32, #tpu.memory_space<vmem>>, vector<136x8xf32>
    %cst = arith.constant dense<0.000000e+00> : vector<136x256xf32>
    %3 = tpu.matmul %2, %0, %cst {dimension_numbers = #tpu.dot_dimension_numbers<[1], [0], [0], [1], [0, 0, 1, 1], [], []>} : vector<136x8xf32>, vector<8x256xf32>, vector<136x256xf32> -> vector<136x256xf32>
    %c0_4 = arith.constant 0 : index
    %c0_5 = arith.constant 0 : index
    %4 = vector.load %arg3[%c0_4, %c0_5] : memref<136x256xf32, #tpu.memory_space<vmem>>, vector<136x256xf32>
    tpu.vector_store %arg3[%c0_4, %c0_5], %3 {strides = array<i32>} : memref<136x256xf32, #tpu.memory_space<vmem>>, vector<136x256xf32>,
    %5 = tpu.iota {dimensions = array<i32: 1>} : vector<8x64xi32>
    %c32_i32 = arith.constant 32 : i32
    %6 = vector.broadcast %c32_i32 : i32 to vector<8x64xi32>
    %7 = arith.cmpi slt, %5, %6 : vector<8x64xi32>
    %c0_6 = arith.constant 0 : index
    %c0_7 = arith.constant 0 : index
    %8 = vector.load %arg3[%c0_6, %c0_7] : memref<136x256xf32, #tpu.memory_space<vmem>>, vector<8x256xf32>
    %9 = vector.extract_strided_slice %8 {offsets = [0, 0], sizes = [8, 192], strides = [1, 1]} : vector<8x256xf32> to vector<8x192xf32>
    %10 = arith.negf %9 : vector<8x192xf32>
    %11 = math.exp %10 : vector<8x192xf32>
    %cst_8 = arith.constant 1.000000e+00 : f32
    %12 = vector.broadcast %cst_8 : f32 to vector<8x192xf32>
    %13 = arith.addf %12, %11 : vector<8x192xf32>
    %14 = arith.divf %12, %13 : vector<8x192xf32>
    %15 = vector.extract_strided_slice %14 {offsets = [0, 0], sizes = [8, 64], strides = [1, 1]} : vector<8x192xf32> to vector<8x64xf32>
    %16 = vector.extract_strided_slice %14 {offsets = [0, 128], sizes = [8, 64], strides = [1, 1]} : vector<8x192xf32> to vector<8x64xf32>
    %17 = vector.extract_strided_slice %8 {offsets = [0, 192], sizes = [8, 64], strides = [1, 1]} : vector<8x256xf32> to vector<8x64xf32>
    %18 = math.tanh %17 : vector<8x64xf32>
    %19 = arith.mulf %15, %18 : vector<8x64xf32>
    %cst_9 = arith.constant 0.000000e+00 : f32
    %20 = vector.broadcast %cst_9 : f32 to vector<8x64xf32>
    %21 = arith.select %7, %19, %20 : vector<8x64xi1>, vector<8x64xf32>
    %22 = math.tanh %21 : vector<8x64xf32>
    %23 = arith.mulf %16, %22 : vector<8x64xf32>
    %c8_10 = arith.constant 8 : index
    %c0_11 = arith.constant 0 : index
    %24 = vector.load %arg3[%c8_10, %c0_11] : memref<136x256xf32, #tpu.memory_space<vmem>>, vector<8x256xf32>
    %cst_12 = arith.constant dense<0.000000e+00> : vector<8x256xf32>
    %25 = tpu.matmul %23, %1, %cst_12 {dimension_numbers = #tpu.dot_dimension_numbers<[1], [0], [0], [1], [0, 0, 1, 1], [], []>} : vector<8x64xf32>, vector<64x256xf32>, vector<8x256xf32> -> vector<8x256xf32>
    %26 = arith.addf %24, %25 : vector<8x256xf32>
    %27 = vector.extract_strided_slice %26 {offsets = [0, 0], sizes = [8, 192], strides = [1, 1]} : vector<8x256xf32> to vector<8x192xf32>
    %28 = arith.negf %27 : vector<8x192xf32>
    %29 = math.exp %28 : vector<8x192xf32>
    %cst_13 = arith.constant 1.000000e+00 : f32
    %30 = vector.broadcast %cst_13 : f32 to vector<8x192xf32>
    %31 = arith.addf %30, %29 : vector<8x192xf32>
    %32 = arith.divf %30, %31 : vector<8x192xf32>
    %33 = vector.extract_strided_slice %32 {offsets = [0, 0], sizes = [8, 64], strides = [1, 1]} : vector<8x192xf32> to vector<8x64xf32>
    %34 = vector.extract_strided_slice %32 {offsets = [0, 64], sizes = [8, 64], strides = [1, 1]} : vector<8x192xf32> to vector<8x64xf32>
    %35 = vector.extract_strided_slice %32 {offsets = [0, 128], sizes = [8, 64], strides = [1, 1]} : vector<8x192xf32> to vector<8x64xf32>
    %36 = vector.extract_strided_slice %26 {offsets = [0, 192], sizes = [8, 64], strides = [1, 1]} : vector<8x256xf32> to vector<8x64xf32>
    %37 = math.tanh %36 : vector<8x64xf32>
    %38 = arith.mulf %34, %21 : vector<8x64xf32>
    %39 = arith.mulf %33, %37 : vector<8x64xf32>
    %40 = arith.addf %38, %39 : vector<8x64xf32>
    %41 = math.tanh %40 : vector<8x64xf32>
    %42 = arith.mulf %35, %41 : vector<8x64xf32>
    %c16 = arith.constant 16 : index
    %c0_14 = arith.constant 0 : index
    %43 = vector.load %arg3[%c16, %c0_14] : memref<136x256xf32, #tpu.memory_space<vmem>>, vector<8x256xf32>
    %cst_15 = arith.constant dense<0.000000e+00> : vector<8x256xf32>
    %44 = tpu.matmul %42, %1, %cst_15 {dimension_numbers = #tpu.dot_dimension_numbers<[1], [0], [0], [1], [0, 0, 1, 1], [], []>} : vector<8x64xf32>, vector<64x256xf32>, vector<8x256xf32> -> vector<8x256xf32>
    %45 = arith.addf %43, %44 : vector<8x256xf32>
    %46 = vector.extract_strided_slice %45 {offsets = [0, 0], sizes = [8, 192], strides = [1, 1]} : vector<8x256xf32> to vector<8x192xf32>
    %47 = arith.negf %46 : vector<8x192xf32>
    %48 = math.exp %47 : vector<8x192xf32>
    %cst_16 = arith.constant 1.000000e+00 : f32
    %49 = vector.broadcast %cst_16 : f32 to vector<8x192xf32>
    %50 = arith.addf %49, %48 : vector<8x192xf32>
    %51 = arith.divf %49, %50 : vector<8x192xf32>
    %52 = vector.extract_strided_slice %51 {offsets = [0, 0], sizes = [8, 64], strides = [1, 1]} : vector<8x192xf32> to vector<8x64xf32>
    %53 = vector.extract_strided_slice %51 {offsets = [0, 64], sizes = [8, 64], strides = [1, 1]} : vector<8x192xf32> to vector<8x64xf32>
    %54 = vector.extract_strided_slice %51 {offsets = [0, 128], sizes = [8, 64], strides = [1, 1]} : vector<8x192xf32> to vector<8x64xf32>
    %55 = vector.extract_strided_slice %45 {offsets = [0, 192], sizes = [8, 64], strides = [1, 1]} : vector<8x256xf32> to vector<8x64xf32>
    %56 = math.tanh %55 : vector<8x64xf32>
    %57 = arith.mulf %53, %40 : vector<8x64xf32>
    %58 = arith.mulf %52, %56 : vector<8x64xf32>
    %59 = arith.addf %57, %58 : vector<8x64xf32>
    %60 = math.tanh %59 : vector<8x64xf32>
    %61 = arith.mulf %54, %60 : vector<8x64xf32>
    %c24 = arith.constant 24 : index
    %c0_17 = arith.constant 0 : index
    %62 = vector.load %arg3[%c24, %c0_17] : memref<136x256xf32, #tpu.memory_space<vmem>>, vector<8x256xf32>
    %cst_18 = arith.constant dense<0.000000e+00> : vector<8x256xf32>
    %63 = tpu.matmul %61, %1, %cst_18 {dimension_numbers = #tpu.dot_dimension_numbers<[1], [0], [0], [1], [0, 0, 1, 1], [], []>} : vector<8x64xf32>, vector<64x256xf32>, vector<8x256xf32> -> vector<8x256xf32>
    %64 = arith.addf %62, %63 : vector<8x256xf32>
    %65 = vector.extract_strided_slice %64 {offsets = [0, 0], sizes = [8, 192], strides = [1, 1]} : vector<8x256xf32> to vector<8x192xf32>
    %66 = arith.negf %65 : vector<8x192xf32>
    %67 = math.exp %66 : vector<8x192xf32>
    %cst_19 = arith.constant 1.000000e+00 : f32
    %68 = vector.broadcast %cst_19 : f32 to vector<8x192xf32>
    %69 = arith.addf %68, %67 : vector<8x192xf32>
    %70 = arith.divf %68, %69 : vector<8x192xf32>
    %71 = vector.extract_strided_slice %70 {offsets = [0, 0], sizes = [8, 64], strides = [1, 1]} : vector<8x192xf32> to vector<8x64xf32>
    %72 = vector.extract_strided_slice %70 {offsets = [0, 64], sizes = [8, 64], strides = [1, 1]} : vector<8x192xf32> to vector<8x64xf32>
    %73 = vector.extract_strided_slice %70 {offsets = [0, 128], sizes = [8, 64], strides = [1, 1]} : vector<8x192xf32> to vector<8x64xf32>
    %74 = vector.extract_strided_slice %64 {offsets = [0, 192], sizes = [8, 64], strides = [1, 1]} : vector<8x256xf32> to vector<8x64xf32>
    %75 = math.tanh %74 : vector<8x64xf32>
    %76 = arith.mulf %72, %59 : vector<8x64xf32>
    %77 = arith.mulf %71, %75 : vector<8x64xf32>
    %78 = arith.addf %76, %77 : vector<8x64xf32>
    %79 = math.tanh %78 : vector<8x64xf32>
    %80 = arith.mulf %73, %79 : vector<8x64xf32>
    %c32 = arith.constant 32 : index
    %c0_20 = arith.constant 0 : index
    %81 = vector.load %arg3[%c32, %c0_20] : memref<136x256xf32, #tpu.memory_space<vmem>>, vector<8x256xf32>
    %cst_21 = arith.constant dense<0.000000e+00> : vector<8x256xf32>
    %82 = tpu.matmul %80, %1, %cst_21 {dimension_numbers = #tpu.dot_dimension_numbers<[1], [0], [0], [1], [0, 0, 1, 1], [], []>} : vector<8x64xf32>, vector<64x256xf32>, vector<8x256xf32> -> vector<8x256xf32>
    %83 = arith.addf %81, %82 : vector<8x256xf32>
    %84 = vector.extract_strided_slice %83 {offsets = [0, 0], sizes = [8, 192], strides = [1, 1]} : vector<8x256xf32> to vector<8x192xf32>
    %85 = arith.negf %84 : vector<8x192xf32>
    %86 = math.exp %85 : vector<8x192xf32>
    %cst_22 = arith.constant 1.000000e+00 : f32
    %87 = vector.broadcast %cst_22 : f32 to vector<8x192xf32>
    %88 = arith.addf %87, %86 : vector<8x192xf32>
    %89 = arith.divf %87, %88 : vector<8x192xf32>
    %90 = vector.extract_strided_slice %89 {offsets = [0, 0], sizes = [8, 64], strides = [1, 1]} : vector<8x192xf32> to vector<8x64xf32>
    %91 = vector.extract_strided_slice %89 {offsets = [0, 64], sizes = [8, 64], strides = [1, 1]} : vector<8x192xf32> to vector<8x64xf32>
    %92 = vector.extract_strided_slice %89 {offsets = [0, 128], sizes = [8, 64], strides = [1, 1]} : vector<8x192xf32> to vector<8x64xf32>
    %93 = vector.extract_strided_slice %83 {offsets = [0, 192], sizes = [8, 64], strides = [1, 1]} : vector<8x256xf32> to vector<8x64xf32>
    %94 = math.tanh %93 : vector<8x64xf32>
    %95 = arith.mulf %91, %78 : vector<8x64xf32>
    %96 = arith.mulf %90, %94 : vector<8x64xf32>
    %97 = arith.addf %95, %96 : vector<8x64xf32>
    %98 = math.tanh %97 : vector<8x64xf32>
    %99 = arith.mulf %92, %98 : vector<8x64xf32>
    %c40 = arith.constant 40 : index
    %c0_23 = arith.constant 0 : index
    %100 = vector.load %arg3[%c40, %c0_23] : memref<136x256xf32, #tpu.memory_space<vmem>>, vector<8x256xf32>
    %cst_24 = arith.constant dense<0.000000e+00> : vector<8x256xf32>
    %101 = tpu.matmul %99, %1, %cst_24 {dimension_numbers = #tpu.dot_dimension_numbers<[1], [0], [0], [1], [0, 0, 1, 1], [], []>} : vector<8x64xf32>, vector<64x256xf32>, vector<8x256xf32> -> vector<8x256xf32>
    %102 = arith.addf %100, %101 : vector<8x256xf32>
    %103 = vector.extract_strided_slice %102 {offsets = [0, 0], sizes = [8, 192], strides = [1, 1]} : vector<8x256xf32> to vector<8x192xf32>
    %104 = arith.negf %103 : vector<8x192xf32>
    %105 = math.exp %104 : vector<8x192xf32>
    %cst_25 = arith.constant 1.000000e+00 : f32
    %106 = vector.broadcast %cst_25 : f32 to vector<8x192xf32>
    %107 = arith.addf %106, %105 : vector<8x192xf32>
    %108 = arith.divf %106, %107 : vector<8x192xf32>
    %109 = vector.extract_strided_slice %108 {offsets = [0, 0], sizes = [8, 64], strides = [1, 1]} : vector<8x192xf32> to vector<8x64xf32>
    %110 = vector.extract_strided_slice %108 {offsets = [0, 64], sizes = [8, 64], strides = [1, 1]} : vector<8x192xf32> to vector<8x64xf32>
    %111 = vector.extract_strided_slice %108 {offsets = [0, 128], sizes = [8, 64], strides = [1, 1]} : vector<8x192xf32> to vector<8x64xf32>
    %112 = vector.extract_strided_slice %102 {offsets = [0, 192], sizes = [8, 64], strides = [1, 1]} : vector<8x256xf32> to vector<8x64xf32>
    %113 = math.tanh %112 : vector<8x64xf32>
    %114 = arith.mulf %110, %97 : vector<8x64xf32>
    %115 = arith.mulf %109, %113 : vector<8x64xf32>
    %116 = arith.addf %114, %115 : vector<8x64xf32>
    %117 = math.tanh %116 : vector<8x64xf32>
    %118 = arith.mulf %111, %117 : vector<8x64xf32>
    %c48 = arith.constant 48 : index
    %c0_26 = arith.constant 0 : index
    %119 = vector.load %arg3[%c48, %c0_26] : memref<136x256xf32, #tpu.memory_space<vmem>>, vector<8x256xf32>
    %cst_27 = arith.constant dense<0.000000e+00> : vector<8x256xf32>
    %120 = tpu.matmul %118, %1, %cst_27 {dimension_numbers = #tpu.dot_dimension_numbers<[1], [0], [0], [1], [0, 0, 1, 1], [], []>} : vector<8x64xf32>, vector<64x256xf32>, vector<8x256xf32> -> vector<8x256xf32>
    %121 = arith.addf %119, %120 : vector<8x256xf32>
    %122 = vector.extract_strided_slice %121 {offsets = [0, 0], sizes = [8, 192], strides = [1, 1]} : vector<8x256xf32> to vector<8x192xf32>
    %123 = arith.negf %122 : vector<8x192xf32>
    %124 = math.exp %123 : vector<8x192xf32>
    %cst_28 = arith.constant 1.000000e+00 : f32
    %125 = vector.broadcast %cst_28 : f32 to vector<8x192xf32>
    %126 = arith.addf %125, %124 : vector<8x192xf32>
    %127 = arith.divf %125, %126 : vector<8x192xf32>
    %128 = vector.extract_strided_slice %127 {offsets = [0, 0], sizes = [8, 64], strides = [1, 1]} : vector<8x192xf32> to vector<8x64xf32>
    %129 = vector.extract_strided_slice %127 {offsets = [0, 64], sizes = [8, 64], strides = [1, 1]} : vector<8x192xf32> to vector<8x64xf32>
    %130 = vector.extract_strided_slice %127 {offsets = [0, 128], sizes = [8, 64], strides = [1, 1]} : vector<8x192xf32> to vector<8x64xf32>
    %131 = vector.extract_strided_slice %121 {offsets = [0, 192], sizes = [8, 64], strides = [1, 1]} : vector<8x256xf32> to vector<8x64xf32>
    %132 = math.tanh %131 : vector<8x64xf32>
    %133 = arith.mulf %129, %116 : vector<8x64xf32>
    %134 = arith.mulf %128, %132 : vector<8x64xf32>
    %135 = arith.addf %133, %134 : vector<8x64xf32>
    %136 = math.tanh %135 : vector<8x64xf32>
    %137 = arith.mulf %130, %136 : vector<8x64xf32>
    %c56 = arith.constant 56 : index
    %c0_29 = arith.constant 0 : index
    %138 = vector.load %arg3[%c56, %c0_29] : memref<136x256xf32, #tpu.memory_space<vmem>>, vector<8x256xf32>
    %cst_30 = arith.constant dense<0.000000e+00> : vector<8x256xf32>
    %139 = tpu.matmul %137, %1, %cst_30 {dimension_numbers = #tpu.dot_dimension_numbers<[1], [0], [0], [1], [0, 0, 1, 1], [], []>} : vector<8x64xf32>, vector<64x256xf32>, vector<8x256xf32> -> vector<8x256xf32>
    %140 = arith.addf %138, %139 : vector<8x256xf32>
    %141 = vector.extract_strided_slice %140 {offsets = [0, 0], sizes = [8, 192], strides = [1, 1]} : vector<8x256xf32> to vector<8x192xf32>
    %142 = arith.negf %141 : vector<8x192xf32>
    %143 = math.exp %142 : vector<8x192xf32>
    %cst_31 = arith.constant 1.000000e+00 : f32
    %144 = vector.broadcast %cst_31 : f32 to vector<8x192xf32>
    %145 = arith.addf %144, %143 : vector<8x192xf32>
    %146 = arith.divf %144, %145 : vector<8x192xf32>
    %147 = vector.extract_strided_slice %146 {offsets = [0, 0], sizes = [8, 64], strides = [1, 1]} : vector<8x192xf32> to vector<8x64xf32>
    %148 = vector.extract_strided_slice %146 {offsets = [0, 64], sizes = [8, 64], strides = [1, 1]} : vector<8x192xf32> to vector<8x64xf32>
    %149 = vector.extract_strided_slice %146 {offsets = [0, 128], sizes = [8, 64], strides = [1, 1]} : vector<8x192xf32> to vector<8x64xf32>
    %150 = vector.extract_strided_slice %140 {offsets = [0, 192], sizes = [8, 64], strides = [1, 1]} : vector<8x256xf32> to vector<8x64xf32>
    %151 = math.tanh %150 : vector<8x64xf32>
    %152 = arith.mulf %148, %135 : vector<8x64xf32>
    %153 = arith.mulf %147, %151 : vector<8x64xf32>
    %154 = arith.addf %152, %153 : vector<8x64xf32>
    %155 = math.tanh %154 : vector<8x64xf32>
    %156 = arith.mulf %149, %155 : vector<8x64xf32>
    %c64 = arith.constant 64 : index
    %c0_32 = arith.constant 0 : index
    %157 = vector.load %arg3[%c64, %c0_32] : memref<136x256xf32, #tpu.memory_space<vmem>>, vector<8x256xf32>
    %cst_33 = arith.constant dense<0.000000e+00> : vector<8x256xf32>
    %158 = tpu.matmul %156, %1, %cst_33 {dimension_numbers = #tpu.dot_dimension_numbers<[1], [0], [0], [1], [0, 0, 1, 1], [], []>} : vector<8x64xf32>, vector<64x256xf32>, vector<8x256xf32> -> vector<8x256xf32>
    %159 = arith.addf %157, %158 : vector<8x256xf32>
    %160 = vector.extract_strided_slice %159 {offsets = [0, 0], sizes = [8, 192], strides = [1, 1]} : vector<8x256xf32> to vector<8x192xf32>
    %161 = arith.negf %160 : vector<8x192xf32>
    %162 = math.exp %161 : vector<8x192xf32>
    %cst_34 = arith.constant 1.000000e+00 : f32
    %163 = vector.broadcast %cst_34 : f32 to vector<8x192xf32>
    %164 = arith.addf %163, %162 : vector<8x192xf32>
    %165 = arith.divf %163, %164 : vector<8x192xf32>
    %166 = vector.extract_strided_slice %165 {offsets = [0, 0], sizes = [8, 64], strides = [1, 1]} : vector<8x192xf32> to vector<8x64xf32>
    %167 = vector.extract_strided_slice %165 {offsets = [0, 64], sizes = [8, 64], strides = [1, 1]} : vector<8x192xf32> to vector<8x64xf32>
    %168 = vector.extract_strided_slice %165 {offsets = [0, 128], sizes = [8, 64], strides = [1, 1]} : vector<8x192xf32> to vector<8x64xf32>
    %169 = vector.extract_strided_slice %159 {offsets = [0, 192], sizes = [8, 64], strides = [1, 1]} : vector<8x256xf32> to vector<8x64xf32>
    %170 = math.tanh %169 : vector<8x64xf32>
    %171 = arith.mulf %167, %154 : vector<8x64xf32>
    %172 = arith.mulf %166, %170 : vector<8x64xf32>
    %173 = arith.addf %171, %172 : vector<8x64xf32>
    %174 = math.tanh %173 : vector<8x64xf32>
    %175 = arith.mulf %168, %174 : vector<8x64xf32>
    %c72 = arith.constant 72 : index
    %c0_35 = arith.constant 0 : index
    %176 = vector.load %arg3[%c72, %c0_35] : memref<136x256xf32, #tpu.memory_space<vmem>>, vector<8x256xf32>
    %cst_36 = arith.constant dense<0.000000e+00> : vector<8x256xf32>
    %177 = tpu.matmul %175, %1, %cst_36 {dimension_numbers = #tpu.dot_dimension_numbers<[1], [0], [0], [1], [0, 0, 1, 1], [], []>} : vector<8x64xf32>, vector<64x256xf32>, vector<8x256xf32> -> vector<8x256xf32>
    %178 = arith.addf %176, %177 : vector<8x256xf32>
    %179 = vector.extract_strided_slice %178 {offsets = [0, 0], sizes = [8, 192], strides = [1, 1]} : vector<8x256xf32> to vector<8x192xf32>
    %180 = arith.negf %179 : vector<8x192xf32>
    %181 = math.exp %180 : vector<8x192xf32>
    %cst_37 = arith.constant 1.000000e+00 : f32
    %182 = vector.broadcast %cst_37 : f32 to vector<8x192xf32>
    %183 = arith.addf %182, %181 : vector<8x192xf32>
    %184 = arith.divf %182, %183 : vector<8x192xf32>
    %185 = vector.extract_strided_slice %184 {offsets = [0, 0], sizes = [8, 64], strides = [1, 1]} : vector<8x192xf32> to vector<8x64xf32>
    %186 = vector.extract_strided_slice %184 {offsets = [0, 64], sizes = [8, 64], strides = [1, 1]} : vector<8x192xf32> to vector<8x64xf32>
    %187 = vector.extract_strided_slice %184 {offsets = [0, 128], sizes = [8, 64], strides = [1, 1]} : vector<8x192xf32> to vector<8x64xf32>
    %188 = vector.extract_strided_slice %178 {offsets = [0, 192], sizes = [8, 64], strides = [1, 1]} : vector<8x256xf32> to vector<8x64xf32>
    %189 = math.tanh %188 : vector<8x64xf32>
    %190 = arith.mulf %186, %173 : vector<8x64xf32>
    %191 = arith.mulf %185, %189 : vector<8x64xf32>
    %192 = arith.addf %190, %191 : vector<8x64xf32>
    %193 = math.tanh %192 : vector<8x64xf32>
    %194 = arith.mulf %187, %193 : vector<8x64xf32>
    %c80 = arith.constant 80 : index
    %c0_38 = arith.constant 0 : index
    %195 = vector.load %arg3[%c80, %c0_38] : memref<136x256xf32, #tpu.memory_space<vmem>>, vector<8x256xf32>
    %cst_39 = arith.constant dense<0.000000e+00> : vector<8x256xf32>
    %196 = tpu.matmul %194, %1, %cst_39 {dimension_numbers = #tpu.dot_dimension_numbers<[1], [0], [0], [1], [0, 0, 1, 1], [], []>} : vector<8x64xf32>, vector<64x256xf32>, vector<8x256xf32> -> vector<8x256xf32>
    %197 = arith.addf %195, %196 : vector<8x256xf32>
    %198 = vector.extract_strided_slice %197 {offsets = [0, 0], sizes = [8, 192], strides = [1, 1]} : vector<8x256xf32> to vector<8x192xf32>
    %199 = arith.negf %198 : vector<8x192xf32>
    %200 = math.exp %199 : vector<8x192xf32>
    %cst_40 = arith.constant 1.000000e+00 : f32
    %201 = vector.broadcast %cst_40 : f32 to vector<8x192xf32>
    %202 = arith.addf %201, %200 : vector<8x192xf32>
    %203 = arith.divf %201, %202 : vector<8x192xf32>
    %204 = vector.extract_strided_slice %203 {offsets = [0, 0], sizes = [8, 64], strides = [1, 1]} : vector<8x192xf32> to vector<8x64xf32>
    %205 = vector.extract_strided_slice %203 {offsets = [0, 64], sizes = [8, 64], strides = [1, 1]} : vector<8x192xf32> to vector<8x64xf32>
    %206 = vector.extract_strided_slice %203 {offsets = [0, 128], sizes = [8, 64], strides = [1, 1]} : vector<8x192xf32> to vector<8x64xf32>
    %207 = vector.extract_strided_slice %197 {offsets = [0, 192], sizes = [8, 64], strides = [1, 1]} : vector<8x256xf32> to vector<8x64xf32>
    %208 = math.tanh %207 : vector<8x64xf32>
    %209 = arith.mulf %205, %192 : vector<8x64xf32>
    %210 = arith.mulf %204, %208 : vector<8x64xf32>
    %211 = arith.addf %209, %210 : vector<8x64xf32>
    %212 = math.tanh %211 : vector<8x64xf32>
    %213 = arith.mulf %206, %212 : vector<8x64xf32>
    %c88 = arith.constant 88 : index
    %c0_41 = arith.constant 0 : index
    %214 = vector.load %arg3[%c88, %c0_41] : memref<136x256xf32, #tpu.memory_space<vmem>>, vector<8x256xf32>
    %cst_42 = arith.constant dense<0.000000e+00> : vector<8x256xf32>
    %215 = tpu.matmul %213, %1, %cst_42 {dimension_numbers = #tpu.dot_dimension_numbers<[1], [0], [0], [1], [0, 0, 1, 1], [], []>} : vector<8x64xf32>, vector<64x256xf32>, vector<8x256xf32> -> vector<8x256xf32>
    %216 = arith.addf %214, %215 : vector<8x256xf32>
    %217 = vector.extract_strided_slice %216 {offsets = [0, 0], sizes = [8, 192], strides = [1, 1]} : vector<8x256xf32> to vector<8x192xf32>
    %218 = arith.negf %217 : vector<8x192xf32>
    %219 = math.exp %218 : vector<8x192xf32>
    %cst_43 = arith.constant 1.000000e+00 : f32
    %220 = vector.broadcast %cst_43 : f32 to vector<8x192xf32>
    %221 = arith.addf %220, %219 : vector<8x192xf32>
    %222 = arith.divf %220, %221 : vector<8x192xf32>
    %223 = vector.extract_strided_slice %222 {offsets = [0, 0], sizes = [8, 64], strides = [1, 1]} : vector<8x192xf32> to vector<8x64xf32>
    %224 = vector.extract_strided_slice %222 {offsets = [0, 64], sizes = [8, 64], strides = [1, 1]} : vector<8x192xf32> to vector<8x64xf32>
    %225 = vector.extract_strided_slice %222 {offsets = [0, 128], sizes = [8, 64], strides = [1, 1]} : vector<8x192xf32> to vector<8x64xf32>
    %226 = vector.extract_strided_slice %216 {offsets = [0, 192], sizes = [8, 64], strides = [1, 1]} : vector<8x256xf32> to vector<8x64xf32>
    %227 = math.tanh %226 : vector<8x64xf32>
    %228 = arith.mulf %224, %211 : vector<8x64xf32>
    %229 = arith.mulf %223, %227 : vector<8x64xf32>
    %230 = arith.addf %228, %229 : vector<8x64xf32>
    %231 = math.tanh %230 : vector<8x64xf32>
    %232 = arith.mulf %225, %231 : vector<8x64xf32>
    %c96 = arith.constant 96 : index
    %c0_44 = arith.constant 0 : index
    %233 = vector.load %arg3[%c96, %c0_44] : memref<136x256xf32, #tpu.memory_space<vmem>>, vector<8x256xf32>
    %cst_45 = arith.constant dense<0.000000e+00> : vector<8x256xf32>
    %234 = tpu.matmul %232, %1, %cst_45 {dimension_numbers = #tpu.dot_dimension_numbers<[1], [0], [0], [1], [0, 0, 1, 1], [], []>} : vector<8x64xf32>, vector<64x256xf32>, vector<8x256xf32> -> vector<8x256xf32>
    %235 = arith.addf %233, %234 : vector<8x256xf32>
    %236 = vector.extract_strided_slice %235 {offsets = [0, 0], sizes = [8, 192], strides = [1, 1]} : vector<8x256xf32> to vector<8x192xf32>
    %237 = arith.negf %236 : vector<8x192xf32>
    %238 = math.exp %237 : vector<8x192xf32>
    %cst_46 = arith.constant 1.000000e+00 : f32
    %239 = vector.broadcast %cst_46 : f32 to vector<8x192xf32>
    %240 = arith.addf %239, %238 : vector<8x192xf32>
    %241 = arith.divf %239, %240 : vector<8x192xf32>
    %242 = vector.extract_strided_slice %241 {offsets = [0, 0], sizes = [8, 64], strides = [1, 1]} : vector<8x192xf32> to vector<8x64xf32>
    %243 = vector.extract_strided_slice %241 {offsets = [0, 64], sizes = [8, 64], strides = [1, 1]} : vector<8x192xf32> to vector<8x64xf32>
    %244 = vector.extract_strided_slice %241 {offsets = [0, 128], sizes = [8, 64], strides = [1, 1]} : vector<8x192xf32> to vector<8x64xf32>
    %245 = vector.extract_strided_slice %235 {offsets = [0, 192], sizes = [8, 64], strides = [1, 1]} : vector<8x256xf32> to vector<8x64xf32>
    %246 = math.tanh %245 : vector<8x64xf32>
    %247 = arith.mulf %243, %230 : vector<8x64xf32>
    %248 = arith.mulf %242, %246 : vector<8x64xf32>
    %249 = arith.addf %247, %248 : vector<8x64xf32>
    %250 = math.tanh %249 : vector<8x64xf32>
    %251 = arith.mulf %244, %250 : vector<8x64xf32>
    %c104 = arith.constant 104 : index
    %c0_47 = arith.constant 0 : index
    %252 = vector.load %arg3[%c104, %c0_47] : memref<136x256xf32, #tpu.memory_space<vmem>>, vector<8x256xf32>
    %cst_48 = arith.constant dense<0.000000e+00> : vector<8x256xf32>
    %253 = tpu.matmul %251, %1, %cst_48 {dimension_numbers = #tpu.dot_dimension_numbers<[1], [0], [0], [1], [0, 0, 1, 1], [], []>} : vector<8x64xf32>, vector<64x256xf32>, vector<8x256xf32> -> vector<8x256xf32>
    %254 = arith.addf %252, %253 : vector<8x256xf32>
    %255 = vector.extract_strided_slice %254 {offsets = [0, 0], sizes = [8, 192], strides = [1, 1]} : vector<8x256xf32> to vector<8x192xf32>
    %256 = arith.negf %255 : vector<8x192xf32>
    %257 = math.exp %256 : vector<8x192xf32>
    %cst_49 = arith.constant 1.000000e+00 : f32
    %258 = vector.broadcast %cst_49 : f32 to vector<8x192xf32>
    %259 = arith.addf %258, %257 : vector<8x192xf32>
    %260 = arith.divf %258, %259 : vector<8x192xf32>
    %261 = vector.extract_strided_slice %260 {offsets = [0, 0], sizes = [8, 64], strides = [1, 1]} : vector<8x192xf32> to vector<8x64xf32>
    %262 = vector.extract_strided_slice %260 {offsets = [0, 64], sizes = [8, 64], strides = [1, 1]} : vector<8x192xf32> to vector<8x64xf32>
    %263 = vector.extract_strided_slice %260 {offsets = [0, 128], sizes = [8, 64], strides = [1, 1]} : vector<8x192xf32> to vector<8x64xf32>
    %264 = vector.extract_strided_slice %254 {offsets = [0, 192], sizes = [8, 64], strides = [1, 1]} : vector<8x256xf32> to vector<8x64xf32>
    %265 = math.tanh %264 : vector<8x64xf32>
    %266 = arith.mulf %262, %249 : vector<8x64xf32>
    %267 = arith.mulf %261, %265 : vector<8x64xf32>
    %268 = arith.addf %266, %267 : vector<8x64xf32>
    %269 = math.tanh %268 : vector<8x64xf32>
    %270 = arith.mulf %263, %269 : vector<8x64xf32>
    %c112 = arith.constant 112 : index
    %c0_50 = arith.constant 0 : index
    %271 = vector.load %arg3[%c112, %c0_50] : memref<136x256xf32, #tpu.memory_space<vmem>>, vector<8x256xf32>
    %cst_51 = arith.constant dense<0.000000e+00> : vector<8x256xf32>
    %272 = tpu.matmul %270, %1, %cst_51 {dimension_numbers = #tpu.dot_dimension_numbers<[1], [0], [0], [1], [0, 0, 1, 1], [], []>} : vector<8x64xf32>, vector<64x256xf32>, vector<8x256xf32> -> vector<8x256xf32>
    %273 = arith.addf %271, %272 : vector<8x256xf32>
    %274 = vector.extract_strided_slice %273 {offsets = [0, 0], sizes = [8, 192], strides = [1, 1]} : vector<8x256xf32> to vector<8x192xf32>
    %275 = arith.negf %274 : vector<8x192xf32>
    %276 = math.exp %275 : vector<8x192xf32>
    %cst_52 = arith.constant 1.000000e+00 : f32
    %277 = vector.broadcast %cst_52 : f32 to vector<8x192xf32>
    %278 = arith.addf %277, %276 : vector<8x192xf32>
    %279 = arith.divf %277, %278 : vector<8x192xf32>
    %280 = vector.extract_strided_slice %279 {offsets = [0, 0], sizes = [8, 64], strides = [1, 1]} : vector<8x192xf32> to vector<8x64xf32>
    %281 = vector.extract_strided_slice %279 {offsets = [0, 64], sizes = [8, 64], strides = [1, 1]} : vector<8x192xf32> to vector<8x64xf32>
    %282 = vector.extract_strided_slice %279 {offsets = [0, 128], sizes = [8, 64], strides = [1, 1]} : vector<8x192xf32> to vector<8x64xf32>
    %283 = vector.extract_strided_slice %273 {offsets = [0, 192], sizes = [8, 64], strides = [1, 1]} : vector<8x256xf32> to vector<8x64xf32>
    %284 = math.tanh %283 : vector<8x64xf32>
    %285 = arith.mulf %281, %268 : vector<8x64xf32>
    %286 = arith.mulf %280, %284 : vector<8x64xf32>
    %287 = arith.addf %285, %286 : vector<8x64xf32>
    %288 = math.tanh %287 : vector<8x64xf32>
    %289 = arith.mulf %282, %288 : vector<8x64xf32>
    %c120 = arith.constant 120 : index
    %c0_53 = arith.constant 0 : index
    %290 = vector.load %arg3[%c120, %c0_53] : memref<136x256xf32, #tpu.memory_space<vmem>>, vector<8x256xf32>
    %cst_54 = arith.constant dense<0.000000e+00> : vector<8x256xf32>
    %291 = tpu.matmul %289, %1, %cst_54 {dimension_numbers = #tpu.dot_dimension_numbers<[1], [0], [0], [1], [0, 0, 1, 1], [], []>} : vector<8x64xf32>, vector<64x256xf32>, vector<8x256xf32> -> vector<8x256xf32>
    %292 = arith.addf %290, %291 : vector<8x256xf32>
    %293 = vector.extract_strided_slice %292 {offsets = [0, 0], sizes = [8, 192], strides = [1, 1]} : vector<8x256xf32> to vector<8x192xf32>
    %294 = arith.negf %293 : vector<8x192xf32>
    %295 = math.exp %294 : vector<8x192xf32>
    %cst_55 = arith.constant 1.000000e+00 : f32
    %296 = vector.broadcast %cst_55 : f32 to vector<8x192xf32>
    %297 = arith.addf %296, %295 : vector<8x192xf32>
    %298 = arith.divf %296, %297 : vector<8x192xf32>
    %299 = vector.extract_strided_slice %298 {offsets = [0, 0], sizes = [8, 64], strides = [1, 1]} : vector<8x192xf32> to vector<8x64xf32>
    %300 = vector.extract_strided_slice %298 {offsets = [0, 64], sizes = [8, 64], strides = [1, 1]} : vector<8x192xf32> to vector<8x64xf32>
    %301 = vector.extract_strided_slice %298 {offsets = [0, 128], sizes = [8, 64], strides = [1, 1]} : vector<8x192xf32> to vector<8x64xf32>
    %302 = vector.extract_strided_slice %292 {offsets = [0, 192], sizes = [8, 64], strides = [1, 1]} : vector<8x256xf32> to vector<8x64xf32>
    %303 = math.tanh %302 : vector<8x64xf32>
    %304 = arith.mulf %300, %287 : vector<8x64xf32>
    %305 = arith.mulf %299, %303 : vector<8x64xf32>
    %306 = arith.addf %304, %305 : vector<8x64xf32>
    %307 = math.tanh %306 : vector<8x64xf32>
    %308 = arith.mulf %301, %307 : vector<8x64xf32>
    %c128 = arith.constant 128 : index
    %c0_56 = arith.constant 0 : index
    %309 = vector.load %arg3[%c128, %c0_56] : memref<136x256xf32, #tpu.memory_space<vmem>>, vector<8x256xf32>
    %cst_57 = arith.constant dense<0.000000e+00> : vector<8x256xf32>
    %310 = tpu.matmul %308, %1, %cst_57 {dimension_numbers = #tpu.dot_dimension_numbers<[1], [0], [0], [1], [0, 0, 1, 1], [], []>} : vector<8x64xf32>, vector<64x256xf32>, vector<8x256xf32> -> vector<8x256xf32>
    %311 = arith.addf %309, %310 : vector<8x256xf32>
    %312 = vector.extract_strided_slice %311 {offsets = [0, 0], sizes = [8, 192], strides = [1, 1]} : vector<8x256xf32> to vector<8x192xf32>
    %313 = arith.negf %312 : vector<8x192xf32>
    %314 = math.exp %313 : vector<8x192xf32>
    %cst_58 = arith.constant 1.000000e+00 : f32
    %315 = vector.broadcast %cst_58 : f32 to vector<8x192xf32>
    %316 = arith.addf %315, %314 : vector<8x192xf32>
    %317 = arith.divf %315, %316 : vector<8x192xf32>
    %318 = vector.extract_strided_slice %317 {offsets = [0, 0], sizes = [8, 64], strides = [1, 1]} : vector<8x192xf32> to vector<8x64xf32>
    %319 = vector.extract_strided_slice %317 {offsets = [0, 64], sizes = [8, 64], strides = [1, 1]} : vector<8x192xf32> to vector<8x64xf32>
    %320 = vector.extract_strided_slice %317 {offsets = [0, 128], sizes = [8, 64], strides = [1, 1]} : vector<8x192xf32> to vector<8x64xf32>
    %321 = vector.extract_strided_slice %311 {offsets = [0, 192], sizes = [8, 64], strides = [1, 1]} : vector<8x256xf32> to vector<8x64xf32>
    %322 = math.tanh %321 : vector<8x64xf32>
    %323 = arith.mulf %319, %306 : vector<8x64xf32>
    %324 = arith.mulf %318, %322 : vector<8x64xf32>
    %325 = arith.addf %323, %324 : vector<8x64xf32>
    %326 = math.tanh %325 : vector<8x64xf32>
    %327 = arith.mulf %320, %326 : vector<8x64xf32>
    %328 = vector.extract_strided_slice %327 {offsets = [0, 32], sizes = [8, 32], strides = [1, 1]} : vector<8x64xf32> to vector<8x32xf32>
    %c72_59 = arith.constant 72 : index
    %c0_60 = arith.constant 0 : index
    %329 = vector.load %arg1[%c72_59, %c0_60] : memref<80x256xf32, #tpu.memory_space<vmem>>, vector<1x32xf32>
    %c72_61 = arith.constant 72 : index
    %c32_62 = arith.constant 32 : index
    %330 = vector.load %arg1[%c72_61, %c32_62] : memref<80x256xf32, #tpu.memory_space<vmem>>, vector<1x1xf32>
    %331 = vector.broadcast %329 : vector<1x32xf32> to vector<8x32xf32>
    %332 = arith.mulf %328, %331 : vector<8x32xf32>
    %cst_63 = arith.constant dense<0.000000e+00> : vector<8xf32>
    %333 = vector.multi_reduction <add>, %332, %cst_63 [1] : vector<8x32xf32> to vector<8xf32>
    %334 = vector.shape_cast %333 : vector<8xf32> to vector<8x1xf32>
    %335 = vector.broadcast %330 : vector<1x1xf32> to vector<8x1xf32>
    %336 = arith.addf %334, %335 : vector<8x1xf32>
    %c0_64 = arith.constant 0 : index
    %c0_65 = arith.constant 0 : index
    %337 = vector.load %arg2[%c0_64, %c0_65] : memref<8x1xf32, #tpu.memory_space<vmem>>, vector<8x1xf32>
    tpu.vector_store %arg2[%c0_64, %c0_65], %336 {strides = array<i32>} : memref<8x1xf32, #tpu.memory_space<vmem>>, vector<8x1xf32>,
    return
  }
}

</mosaic_0001>

<llo_original>
// kernel: tpu_custom_call.1
$region0: #{tpu_custom_call.1}
  #allocation0 [shape = 'u32[]', space=smem, size = 0x4, offset = 0x4, fixed_abs, tag = 'smem constant byte address 0x4 - core index']
  #allocation1 [shape = 'u32[144,128]{1,0:T(1,128)}', space=vmem, size = 0x12000, scoped, tag = 'internal scratch']
  #allocation2 [shape = 'f32[136,256]{1,0:T(8,128)}', space=vmem, size = 0x22000, scoped, tag = 'scratch operand']
  %s0 = inlined_call_operand.vmem [shape: f32[136,8], index: 0, kind: input, shape index: {}]
  %s1 = inlined_call_operand.hbm [shape: f32[80,256], index: 1, kind: input, shape index: {}]
  %s2 = inlined_call_operand.vmem [shape: f32[8,1], index: 2, kind: output, shape index: {}]
  %s3 = sld [smem:[#allocation0]]
  $region22: #{tpu_custom_call.1} parent=0
    _
  %s5 = ssub.s32 1, %s3
  %s6 = scalar_select 0, %s5, %s3
  $region1: #{tpu_custom_call.1} parent=0
    #allocation3 [shape = 'u8[81920]{0}', space=vmem, size = 0x14000, scoped, tag = 'input window, operand 1, single buffered']
    #allocation4 [shape = 's32[1]{0}', space=sflag, size = 0x4, scoped, tag = 'scoped memory for tpu_custom_call.1']
    %7 = vsyncpa [#allocation4], 0
    // Predicated region
    $region2: #{tpu_custom_call.1} parent=1 // pred_check
      _
    $region3: #{tpu_custom_call.1} parent=1 // pred_check_branch
      %9 = sbr.rel (0) target = $region5
    $region4: #{tpu_custom_call.1} parent=1 // pred_region
      _
    $region5: #{tpu_custom_call.1} parent=1 // pred_fallthru
      _
    // Predicated region
    $region6: #{tpu_custom_call.1} parent=1 // pred_check
      _
    $region7: #{tpu_custom_call.1} parent=1 // pred_check_branch
      %11 = sbr.rel (0) target = $region9
    $region8: #{tpu_custom_call.1} parent=1 // pred_region
      %s13 = ssub.s32 2560, 2560
      %14 = vsyncadd [#allocation4], %s13
      %s15 = sshll.u32 [#allocation3], 4
      %s16 = int_to_ptr.vmem [resolvable:$true] %s15
      %21 = dma.hbm_to_vmem [thread:$0]  %s1, 2560, %s16, [#allocation4], 256, 256, 16
    $region9: #{tpu_custom_call.1} parent=1 // pred_fallthru
      _
    // Predicated region
    $region10: #{tpu_custom_call.1} parent=1 // pred_check
      _
    $region11: #{tpu_custom_call.1} parent=1 // pred_check_branch
      %23 = sbr.rel (0) target = $region13
    $region12: #{tpu_custom_call.1} parent=1 // pred_region
      %24 = dma.done [#allocation4], 2560
    $region13: #{tpu_custom_call.1} parent=1 // pred_fallthru
      _
    %v25 = vld [vmem:[#allocation3] sm:$0xff]
    %v26 = vld [vmem:[#allocation3 + $0x8] sm:$0xff]
    %v27 = vld [vmem:[#allocation3 + $0x10] sm:$0xff]
    %v28 = vld [vmem:[#allocation3 + $0x18] sm:$0xff]
    %v29 = vld [vmem:[#allocation3 + $0x20] sm:$0xff]
    %v30 = vld [vmem:[#allocation3 + $0x28] sm:$0xff]
    %v31 = vld [vmem:[#allocation3 + $0x30] sm:$0xff]
    %v32 = vld [vmem:[#allocation3 + $0x38] sm:$0xff]
    %v33 = vld [vmem:[#allocation3 + $0x40] sm:$0xff]
    %v34 = vld [vmem:[#allocation3 + $0x48] sm:$0xff]
    %v35 = vld [vmem:[#allocation3 + $0x50] sm:$0xff]
    %v36 = vld [vmem:[#allocation3 + $0x58] sm:$0xff]
    %v37 = vld [vmem:[#allocation3 + $0x60] sm:$0xff]
    %v38 = vld [vmem:[#allocation3 + $0x68] sm:$0xff]
    %v39 = vld [vmem:[#allocation3 + $0x70] sm:$0xff]
    %v40 = vld [vmem:[#allocation3 + $0x78] sm:$0xff]
    %v41 = vld [vmem:[#allocation3 + $0x80] sm:$0xff]
    %v42 = vld [vmem:[#allocation3 + $0x88] sm:$0xff]
    %v43 = vld [vmem:[%s0] sm:$0xff]
    %v44 = vld [vmem:[%s0 + $0x8] sm:$0xff]
    %v45 = vld [vmem:[%s0 + $0x10] sm:$0xff]
    %v46 = vld [vmem:[%s0 + $0x18] sm:$0xff]
    %v47 = vld [vmem:[%s0 + $0x20] sm:$0xff]
    %v48 = vld [vmem:[%s0 + $0x28] sm:$0xff]
    %v49 = vld [vmem:[%s0 + $0x30] sm:$0xff]
    %v50 = vld [vmem:[%s0 + $0x38] sm:$0xff]
    %v51 = vld [vmem:[%s0 + $0x40] sm:$0xff]
    %v52 = vld [vmem:[%s0 + $0x48] sm:$0xff]
    %v53 = vld [vmem:[%s0 + $0x50] sm:$0xff]
    %v54 = vld [vmem:[%s0 + $0x58] sm:$0xff]
    %v55 = vld [vmem:[%s0 + $0x60] sm:$0xff]
    %v56 = vld [vmem:[%s0 + $0x68] sm:$0xff]
    %v57 = vld [vmem:[%s0 + $0x70] sm:$0xff]
    %v58 = vld [vmem:[%s0 + $0x78] sm:$0xff]
    %v59 = vld [vmem:[%s0 + $0x80] sm:$0xff]
    %vm60 = vcmask 64512
    %v62 = vsel %vm60, %v43, 0
    %v65 = vsel %vm60, %v44, 0
    %v68 = vsel %vm60, %v45, 0
    %v71 = vsel %vm60, %v46, 0
    %v74 = vsel %vm60, %v47, 0
    %v77 = vsel %vm60, %v48, 0
    %v80 = vsel %vm60, %v49, 0
    %v83 = vsel %vm60, %v50, 0
    %v86 = vsel %vm60, %v51, 0
    %v89 = vsel %vm60, %v52, 0
    %v92 = vsel %vm60, %v53, 0
    %v95 = vsel %vm60, %v54, 0
    %v98 = vsel %vm60, %v55, 0
    %v101 = vsel %vm60, %v56, 0
    %v104 = vsel %vm60, %v57, 0
    %v107 = vsel %vm60, %v58, 0
    %v110 = vsel %vm60, %v59, 0
    %112 = vmatprep.subr.mxu0 %v26
    %113 = vmatpush1.msra.mxu0 %v25
    %114 = vmatprep.subr.mxu0 0.0
    %115 = vmatpush1.msra.mxu0 0.0
    %116 = vmatprep.subr.mxu0 0.0
    %117 = vmatpush1.msra.mxu0 0.0
    %118 = vmatprep.subr.mxu0 0.0
    %119 = vmatpush1.msra.mxu0 0.0
    %120 = vmatprep.subr.mxu0 0.0
    %121 = vmatpush1.msra.mxu0 0.0
    %122 = vmatprep.subr.mxu0 0.0
    %123 = vmatpush1.msra.mxu0 0.0
    %124 = vmatprep.subr.mxu0 0.0
    %125 = vmatpush1.msra.mxu0 0.0
    %126 = vmatprep.subr.mxu0 0.0
    %127 = vmatpush1.msra.mxu0 0.0
    %128 = vmatprep.subr.mxu0 0.0
    %129 = vmatpush1.msra.mxu0 0.0
    %130 = vmatprep.subr.mxu0 0.0
    %131 = vmatpush1.msra.mxu0 0.0
    %132 = vmatprep.subr.mxu0 0.0
    %133 = vmatpush1.msra.mxu0 0.0
    %134 = vmatprep.subr.mxu0 0.0
    %135 = vmatpush1.msra.mxu0 0.0
    %136 = vmatprep.subr.mxu0 0.0
    %137 = vmatpush1.msra.mxu0 0.0
    %138 = vmatprep.subr.mxu0 0.0
    %139 = vmatpush1.msra.mxu0 0.0
    %140 = vmatprep.subr.mxu0 0.0
    %141 = vmatpush1.msra.mxu0 0.0
    %142 = vmatprep.subr.mxu0 0.0
    %143 = vmatpush1.msra.mxu0 0.0
    %144 = vmatprep.subr.mxu0 0.0
    %145 = vmatpush1.msra.mxu0 0.0
    %146 = vmatprep.subr.mxu0 0.0
    %147 = vmatpush1.msra.mxu0 0.0
    %148 = vmatprep.subr.mxu0 0.0
    %149 = vmatpush1.msra.mxu0 0.0
    %150 = vmatprep.subr.mxu0 0.0
    %151 = vmatpush1.msra.mxu0 0.0
    %152 = vmatprep.subr.mxu0 0.0
    %153 = vmatpush1.msra.mxu0 0.0
    %154 = vmatprep.subr.mxu0 0.0
    %155 = vmatpush1.msra.mxu0 0.0
    %156 = vmatprep.subr.mxu0 0.0
    %157 = vmatpush1.msra.mxu0 0.0
    %158 = vmatprep.subr.mxu0 0.0
    %159 = vmatpush1.msra.mxu0 0.0
    %160 = vmatprep.subr.mxu0 0.0
    %161 = vmatpush1.msra.mxu0 0.0
    %162 = vmatprep.subr.mxu0 0.0
    %163 = vmatpush1.msra.mxu0 0.0
    %164 = vmatprep.subr.mxu0 0.0
    %165 = vmatpush1.msra.mxu0 0.0
    %166 = vmatprep.subr.mxu0 0.0
    %167 = vmatpush1.msra.mxu0 0.0
    %168 = vmatprep.subr.mxu0 0.0
    %169 = vmatpush1.msra.mxu0 0.0
    %170 = vmatprep.subr.mxu0 0.0
    %171 = vmatpush1.msra.mxu0 0.0
    %172 = vmatprep.subr.mxu0 0.0
    %173 = vmatpush1.msra.mxu0 0.0
    %174 = vmatprep.subr.mxu0 0.0
    %175 = vmatpush1.msra.mxu0 0.0
    %176 = vmatprep.mubr.f32.mxu0 0.0
    %177 = vmatmul.mubr.f32.gmra.mrb[0].mxu0 %v62
    %v178 = vpop.f32.mrb[0].mxu0
    %v179 = vadd.f32 0.0, %v178
    %v180 = vpop.f32.mrb[0].mxu0
    %v181 = vadd.f32 0.0, %v180
    %182 = vmatprep.mubr.f32.mxu0 0.0
    %183 = vmatmul.mubr.f32.gmra.mrb[0].mxu0 %v65
    %v184 = vpop.f32.mrb[0].mxu0
    %v185 = vadd.f32 0.0, %v184
    %v186 = vpop.f32.mrb[0].mxu0
    %v187 = vadd.f32 0.0, %v186
    %188 = vmatprep.mubr.f32.mxu0 0.0
    %189 = vmatmul.mubr.f32.gmra.mrb[0].mxu0 %v68
    %v190 = vpop.f32.mrb[0].mxu0
    %v191 = vadd.f32 0.0, %v190
    %v192 = vpop.f32.mrb[0].mxu0
    %v193 = vadd.f32 0.0, %v192
    %194 = vmatprep.mubr.f32.mxu0 0.0
    %195 = vmatmul.mubr.f32.gmra.mrb[0].mxu0 %v71
    %v196 = vpop.f32.mrb[0].mxu0
    %v197 = vadd.f32 0.0, %v196
    %v198 = vpop.f32.mrb[0].mxu0
    %v199 = vadd.f32 0.0, %v198
    %200 = vmatprep.mubr.f32.mxu0 0.0
    %201 = vmatmul.mubr.f32.gmra.mrb[0].mxu0 %v74
    %v202 = vpop.f32.mrb[0].mxu0
    %v203 = vadd.f32 0.0, %v202
    %v204 = vpop.f32.mrb[0].mxu0
    %v205 = vadd.f32 0.0, %v204
    %206 = vmatprep.mubr.f32.mxu0 0.0
    %207 = vmatmul.mubr.f32.gmra.mrb[0].mxu0 %v77
    %v208 = vpop.f32.mrb[0].mxu0
    %v209 = vadd.f32 0.0, %v208
    %v210 = vpop.f32.mrb[0].mxu0
    %v211 = vadd.f32 0.0, %v210
    %212 = vmatprep.mubr.f32.mxu0 0.0
    %213 = vmatmul.mubr.f32.gmra.mrb[0].mxu0 %v80
    %v214 = vpop.f32.mrb[0].mxu0
    %v215 = vadd.f32 0.0, %v214
    %v216 = vpop.f32.mrb[0].mxu0
    %v217 = vadd.f32 0.0, %v216
    %218 = vmatprep.mubr.f32.mxu0 0.0
    %219 = vmatmul.mubr.f32.gmra.mrb[0].mxu0 %v83
    %v220 = vpop.f32.mrb[0].mxu0
    %v221 = vadd.f32 0.0, %v220
    %v222 = vpop.f32.mrb[0].mxu0
    %v223 = vadd.f32 0.0, %v222
    %224 = vmatprep.mubr.f32.mxu0 0.0
    %225 = vmatmul.mubr.f32.gmra.mrb[0].mxu0 %v86
    %v226 = vpop.f32.mrb[0].mxu0
    %v227 = vadd.f32 0.0, %v226
    %v228 = vpop.f32.mrb[0].mxu0
    %v229 = vadd.f32 0.0, %v228
    %230 = vmatprep.mubr.f32.mxu0 0.0
    %231 = vmatmul.mubr.f32.gmra.mrb[0].mxu0 %v89
    %v232 = vpop.f32.mrb[0].mxu0
    %v233 = vadd.f32 0.0, %v232
    %v234 = vpop.f32.mrb[0].mxu0
    %v235 = vadd.f32 0.0, %v234
    %236 = vmatprep.mubr.f32.mxu0 0.0
    %237 = vmatmul.mubr.f32.gmra.mrb[0].mxu0 %v92
    %v238 = vpop.f32.mrb[0].mxu0
    %v239 = vadd.f32 0.0, %v238
    %v240 = vpop.f32.mrb[0].mxu0
    %v241 = vadd.f32 0.0, %v240
    %242 = vmatprep.mubr.f32.mxu0 0.0
    %243 = vmatmul.mubr.f32.gmra.mrb[0].mxu0 %v95
    %v244 = vpop.f32.mrb[0].mxu0
    %v245 = vadd.f32 0.0, %v244
    %v246 = vpop.f32.mrb[0].mxu0
    %v247 = vadd.f32 0.0, %v246
    %248 = vmatprep.mubr.f32.mxu0 0.0
    %249 = vmatmul.mubr.f32.gmra.mrb[0].mxu0 %v98
    %v250 = vpop.f32.mrb[0].mxu0
    %v251 = vadd.f32 0.0, %v250
    %v252 = vpop.f32.mrb[0].mxu0
    %v253 = vadd.f32 0.0, %v252
    %254 = vmatprep.mubr.f32.mxu0 0.0
    %255 = vmatmul.mubr.f32.gmra.mrb[0].mxu0 %v101
    %v256 = vpop.f32.mrb[0].mxu0
    %v257 = vadd.f32 0.0, %v256
    %v258 = vpop.f32.mrb[0].mxu0
    %v259 = vadd.f32 0.0, %v258
    %260 = vmatprep.mubr.f32.mxu0 0.0
    %261 = vmatmul.mubr.f32.gmra.mrb[0].mxu0 %v104
    %v262 = vpop.f32.mrb[0].mxu0
    %v263 = vadd.f32 0.0, %v262
    %v264 = vpop.f32.mrb[0].mxu0
    %v265 = vadd.f32 0.0, %v264
    %266 = vmatprep.mubr.f32.mxu0 0.0
    %267 = vmatmul.mubr.f32.gmra.mrb[0].mxu0 %v107
    %v268 = vpop.f32.mrb[0].mxu0
    %v269 = vadd.f32 0.0, %v268
    %v270 = vpop.f32.mrb[0].mxu0
    %v271 = vadd.f32 0.0, %v270
    %272 = vmatprep.mubr.f32.mxu0 0.0
    %273 = vmatmul.mubr.f32.gmra.mrb[0].mxu0 %v110
    %v274 = vpop.f32.mrb[0].mxu0
    %v275 = vadd.f32 0.0, %v274
    %v276 = vpop.f32.mrb[0].mxu0
    %v277 = vadd.f32 0.0, %v276
    %278 = vdwg.mxu0
    %279 = vst [vmem:[#allocation2] sm:$0xff] %v179
    %280 = vst [vmem:[#allocation2 + $0x8] sm:$0xff] %v181
    %281 = vst [vmem:[#allocation2 + $0x10] sm:$0xff] %v185
    %282 = vst [vmem:[#allocation2 + $0x18] sm:$0xff] %v187
    %283 = vst [vmem:[#allocation2 + $0x20] sm:$0xff] %v191
    %284 = vst [vmem:[#allocation2 + $0x28] sm:$0xff] %v193
    %285 = vst [vmem:[#allocation2 + $0x30] sm:$0xff] %v197
    %286 = vst [vmem:[#allocation2 + $0x38] sm:$0xff] %v199
    %287 = vst [vmem:[#allocation2 + $0x40] sm:$0xff] %v203
    %288 = vst [vmem:[#allocation2 + $0x48] sm:$0xff] %v205
    %289 = vst [vmem:[#allocation2 + $0x50] sm:$0xff] %v209
    %290 = vst [vmem:[#allocation2 + $0x58] sm:$0xff] %v211
    %291 = vst [vmem:[#allocation2 + $0x60] sm:$0xff] %v215
    %292 = vst [vmem:[#allocation2 + $0x68] sm:$0xff] %v217
    %293 = vst [vmem:[#allocation2 + $0x70] sm:$0xff] %v221
    %294 = vst [vmem:[#allocation2 + $0x78] sm:$0xff] %v223
    %295 = vst [vmem:[#allocation2 + $0x80] sm:$0xff] %v227
    %296 = vst [vmem:[#allocation2 + $0x88] sm:$0xff] %v229
    %297 = vst [vmem:[#allocation2 + $0x90] sm:$0xff] %v233
    %298 = vst [vmem:[#allocation2 + $0x98] sm:$0xff] %v235
    %299 = vst [vmem:[#allocation2 + $0xa0] sm:$0xff] %v239
    %300 = vst [vmem:[#allocation2 + $0xa8] sm:$0xff] %v241
    %301 = vst [vmem:[#allocation2 + $0xb0] sm:$0xff] %v245
    %302 = vst [vmem:[#allocation2 + $0xb8] sm:$0xff] %v247
    %303 = vst [vmem:[#allocation2 + $0xc0] sm:$0xff] %v251
    %304 = vst [vmem:[#allocation2 + $0xc8] sm:$0xff] %v253
    %305 = vst [vmem:[#allocation2 + $0xd0] sm:$0xff] %v257
    %306 = vst [vmem:[#allocation2 + $0xd8] sm:$0xff] %v259
    %307 = vst [vmem:[#allocation2 + $0xe0] sm:$0xff] %v263
    %308 = vst [vmem:[#allocation2 + $0xe8] sm:$0xff] %v265
    %309 = vst [vmem:[#allocation2 + $0xf0] sm:$0xff] %v269
    %310 = vst [vmem:[#allocation2 + $0xf8] sm:$0xff] %v271
    %311 = vst [vmem:[#allocation2 + $0x100] sm:$0xff] %v275
    %312 = vst [vmem:[#allocation2 + $0x108] sm:$0xff] %v277
    %v313 = vlaneseq
    %v314 = vand.u32 %v313, 127
    %vm315 = vcmp.lt.s32.totalorder %v314, 32
    %v316 = vld [vmem:[#allocation2] sm:$0xff]
    %v317 = vld [vmem:[#allocation2 + $0x8] sm:$0xff]
    %v318 = vxor.u32 %v316, 2147483648
    %v319 = vxor.u32 %v317, 2147483648
    %v320 = vmul.f32 %v318, 1.442695
    %v321 = vpow.pop %v320
    %v322 = vmul.f32 %v319, 1.442695
    %v323 = vpow.pop %v322
    %v324 = vadd.f32 %v321, 1.0
    %v325 = vadd.f32 %v323, 1.0
    %v326 = vrcp.pop %v324
    %v327 = vmul.f32 1.0, %v326
    %v328 = vrcp.pop %v325
    %v329 = vmul.f32 1.0, %v328
    %v330 = vtanh.pop %v317
    %332 = vrot.lane.b32.xlu0 %v330, 64
    %v333 = vpop.permute.xlu0 %332
    %v335 = vmul.f32 %v327, %v333
    %v336 = vsel %vm315, %v335, 0.0
    %v337 = vtanh.pop %v336
    %v338 = vmul.f32 %v329, %v337
    %v339 = vld [vmem:[#allocation2 + $0x10] sm:$0xff]
    %v340 = vld [vmem:[#allocation2 + $0x18] sm:$0xff]
    %vm341 = vcmask 523264
    %v343 = vsel %vm341, %v338, 0
    %345 = vmatprep.subr.mxu0 %v28
    %346 = vmatpush1.msra.mxu0 %v27
    %347 = vmatprep.subr.mxu0 %v30
    %348 = vmatpush1.msra.mxu0 %v29
    %349 = vmatprep.subr.mxu0 %v32
    %350 = vmatpush1.msra.mxu0 %v31
    %351 = vmatprep.subr.mxu0 %v34
    %352 = vmatpush1.msra.mxu0 %v33
    %353 = vmatprep.subr.mxu0 %v36
    %354 = vmatpush1.msra.mxu0 %v35
    %355 = vmatprep.subr.mxu0 %v38
    %356 = vmatpush1.msra.mxu0 %v37
    %357 = vmatprep.subr.mxu0 %v40
    %358 = vmatpush1.msra.mxu0 %v39
    %359 = vmatprep.subr.mxu0 %v42
    %360 = vmatpush1.msra.mxu0 %v41
    %361 = vmatprep.subr.mxu0 0.0
    %362 = vmatpush1.msra.mxu0 0.0
    %363 = vmatprep.subr.mxu0 0.0
    %364 = vmatpush1.msra.mxu0 0.0
    %365 = vmatprep.subr.mxu0 0.0
    %366 = vmatpush1.msra.mxu0 0.0
    %367 = vmatprep.subr.mxu0 0.0
    %368 = vmatpush1.msra.mxu0 0.0
    %369 = vmatprep.subr.mxu0 0.0
    %370 = vmatpush1.msra.mxu0 0.0
    %371 = vmatprep.subr.mxu0 0.0
    %372 = vmatpush1.msra.mxu0 0.0
    %373 = vmatprep.subr.mxu0 0.0
    %374 = vmatpush1.msra.mxu0 0.0
    %375 = vmatprep.subr.mxu0 0.0
    %376 = vmatpush1.msra.mxu0 0.0
    %377 = vmatprep.subr.mxu0 0.0
    %378 = vmatpush1.msra.mxu0 0.0
    %379 = vmatprep.subr.mxu0 0.0
    %380 = vmatpush1.msra.mxu0 0.0
    %381 = vmatprep.subr.mxu0 0.0
    %382 = vmatpush1.msra.mxu0 0.0
    %383 = vmatprep.subr.mxu0 0.0
    %384 = vmatpush1.msra.mxu0 0.0
    %385 = vmatprep.subr.mxu0 0.0
    %386 = vmatpush1.msra.mxu0 0.0
    %387 = vmatprep.subr.mxu0 0.0
    %388 = vmatpush1.msra.mxu0 0.0
    %389 = vmatprep.subr.mxu0 0.0
    %390 = vmatpush1.msra.mxu0 0.0
    %391 = vmatprep.subr.mxu0 0.0
    %392 = vmatpush1.msra.mxu0 0.0
    %393 = vmatprep.subr.mxu0 0.0
    %394 = vmatpush1.msra.mxu0 0.0
    %395 = vmatprep.subr.mxu0 0.0
    %396 = vmatpush1.msra.mxu0 0.0
    %397 = vmatprep.subr.mxu0 0.0
    %398 = vmatpush1.msra.mxu0 0.0
    %399 = vmatprep.subr.mxu0 0.0
    %400 = vmatpush1.msra.mxu0 0.0
    %401 = vmatprep.subr.mxu0 0.0
    %402 = vmatpush1.msra.mxu0 0.0
    %403 = vmatprep.subr.mxu0 0.0
    %404 = vmatpush1.msra.mxu0 0.0
    %405 = vmatprep.subr.mxu0 0.0
    %406 = vmatpush1.msra.mxu0 0.0
    %407 = vmatprep.subr.mxu0 0.0
    %408 = vmatpush1.msra.mxu0 0.0
    %409 = vmatprep.mubr.f32.mxu0 0.0
    %410 = vmatmul.mubr.f32.gmra.mrb[0].mxu0 %v343
    %v411 = vpop.f32.mrb[0].mxu0
    %v412 = vadd.f32 0.0, %v411
    %v413 = vpop.f32.mrb[0].mxu0
    %v414 = vadd.f32 0.0, %v413
    %415 = vdwg.mxu0
    %v416 = vadd.f32 %v339, %v412
    %v417 = vadd.f32 %v340, %v414
    %v418 = vxor.u32 %v416, 2147483648
    %v419 = vxor.u32 %v417, 2147483648
    %v420 = vmul.f32 %v418, 1.442695
    %v421 = vpow.pop %v420
    %v422 = vmul.f32 %v419, 1.442695
    %v423 = vpow.pop %v422
    %v424 = vadd.f32 %v421, 1.0
    %v425 = vadd.f32 %v423, 1.0
    %v426 = vrcp.pop %v424
    %v427 = vmul.f32 1.0, %v426
    %v428 = vrcp.pop %v425
    %v429 = vmul.f32 1.0, %v428
    %v430 = vtanh.pop %v417
    %432 = vrot.lane.b32.xlu0 %v336, 64
    %v433 = vpop.permute.xlu0 %432
    %v435 = vmul.f32 %v427, %v433
    %437 = vrot.lane.b32.xlu0 %v430, 64
    %v438 = vpop.permute.xlu0 %437
    %v440 = vmul.f32 %v427, %v438
    %442 = vrot.lane.b32.xlu0 %v440, 64
    %v443 = vpop.permute.xlu0 %442
    %v445 = vadd.f32 %v435, %v443
    %v446 = vtanh.pop %v445
    %448 = vrot.lane.b32.xlu0 %v446, 64
    %v449 = vpop.permute.xlu0 %448
    %v451 = vmul.f32 %v429, %v449
    %v452 = vld [vmem:[#allocation2 + $0x20] sm:$0xff]
    %v453 = vld [vmem:[#allocation2 + $0x28] sm:$0xff]
    %v455 = vsel %vm341, %v451, 0
    %457 = vmatprep.subr.mxu0 %v28
    %458 = vmatpush1.msra.mxu0 %v27
    %459 = vmatprep.subr.mxu0 %v30
    %460 = vmatpush1.msra.mxu0 %v29
    %461 = vmatprep.subr.mxu0 %v32
    %462 = vmatpush1.msra.mxu0 %v31
    %463 = vmatprep.subr.mxu0 %v34
    %464 = vmatpush1.msra.mxu0 %v33
    %465 = vmatprep.subr.mxu0 %v36
    %466 = vmatpush1.msra.mxu0 %v35
    %467 = vmatprep.subr.mxu0 %v38
    %468 = vmatpush1.msra.mxu0 %v37
    %469 = vmatprep.subr.mxu0 %v40
    %470 = vmatpush1.msra.mxu0 %v39
    %471 = vmatprep.subr.mxu0 %v42
    %472 = vmatpush1.msra.mxu0 %v41
    %473 = vmatprep.subr.mxu0 0.0
    %474 = vmatpush1.msra.mxu0 0.0
    %475 = vmatprep.subr.mxu0 0.0
    %476 = vmatpush1.msra.mxu0 0.0
    %477 = vmatprep.subr.mxu0 0.0
    %478 = vmatpush1.msra.mxu0 0.0
    %479 = vmatprep.subr.mxu0 0.0
    %480 = vmatpush1.msra.mxu0 0.0
    %481 = vmatprep.subr.mxu0 0.0
    %482 = vmatpush1.msra.mxu0 0.0
    %483 = vmatprep.subr.mxu0 0.0
    %484 = vmatpush1.msra.mxu0 0.0
    %485 = vmatprep.subr.mxu0 0.0
    %486 = vmatpush1.msra.mxu0 0.0
    %487 = vmatprep.subr.mxu0 0.0
    %488 = vmatpush1.msra.mxu0 0.0
    %489 = vmatprep.subr.mxu0 0.0
    %490 = vmatpush1.msra.mxu0 0.0
    %491 = vmatprep.subr.mxu0 0.0
    %492 = vmatpush1.msra.mxu0 0.0
    %493 = vmatprep.subr.mxu0 0.0
    %494 = vmatpush1.msra.mxu0 0.0
    %495 = vmatprep.subr.mxu0 0.0
    %496 = vmatpush1.msra.mxu0 0.0
    %497 = vmatprep.subr.mxu0 0.0
    %498 = vmatpush1.msra.mxu0 0.0
    %499 = vmatprep.subr.mxu0 0.0
    %500 = vmatpush1.msra.mxu0 0.0
    %501 = vmatprep.subr.mxu0 0.0
    %502 = vmatpush1.msra.mxu0 0.0
    %503 = vmatprep.subr.mxu0 0.0
    %504 = vmatpush1.msra.mxu0 0.0
    %505 = vmatprep.subr.mxu0 0.0
    %506 = vmatpush1.msra.mxu0 0.0
    %507 = vmatprep.subr.mxu0 0.0
    %508 = vmatpush1.msra.mxu0 0.0
    %509 = vmatprep.subr.mxu0 0.0
    %510 = vmatpush1.msra.mxu0 0.0
    %511 = vmatprep.subr.mxu0 0.0
    %512 = vmatpush1.msra.mxu0 0.0
    %513 = vmatprep.subr.mxu0 0.0
    %514 = vmatpush1.msra.mxu0 0.0
    %515 = vmatprep.subr.mxu0 0.0
    %516 = vmatpush1.msra.mxu0 0.0
    %517 = vmatprep.subr.mxu0 0.0
    %518 = vmatpush1.msra.mxu0 0.0
    %519 = vmatprep.subr.mxu0 0.0
    %520 = vmatpush1.msra.mxu0 0.0
    %521 = vmatprep.mubr.f32.mxu0 0.0
    %522 = vmatmul.mubr.f32.gmra.mrb[0].mxu0 %v455
    %v523 = vpop.f32.mrb[0].mxu0
    %v524 = vadd.f32 0.0, %v523
    %v525 = vpop.f32.mrb[0].mxu0
    %v526 = vadd.f32 0.0, %v525
    %527 = vdwg.mxu0
    %v528 = vadd.f32 %v452, %v524
    %v529 = vadd.f32 %v453, %v526
    %v530 = vxor.u32 %v528, 2147483648
    %v531 = vxor.u32 %v529, 2147483648
    %v532 = vmul.f32 %v530, 1.442695
    %v533 = vpow.pop %v532
    %v534 = vmul.f32 %v531, 1.442695
    %v535 = vpow.pop %v534
    %v536 = vadd.f32 %v533, 1.0
    %v537 = vadd.f32 %v535, 1.0
    %v538 = vrcp.pop %v536
    %v539 = vmul.f32 1.0, %v538
    %v540 = vrcp.pop %v537
    %v541 = vmul.f32 1.0, %v540
    %v542 = vtanh.pop %v529
    %v543 = vmul.f32 %v539, %v445
    %545 = vrot.lane.b32.xlu0 %v542, 64
    %v546 = vpop.permute.xlu0 %545
    %v548 = vmul.f32 %v539, %v546
    %550 = vrot.lane.b32.xlu0 %v548, 64
    %v551 = vpop.permute.xlu0 %550
    %v553 = vadd.f32 %v543, %v551
    %v554 = vtanh.pop %v553
    %556 = vrot.lane.b32.xlu0 %v554, 64
    %v557 = vpop.permute.xlu0 %556
    %v559 = vmul.f32 %v541, %v557
    %v560 = vld [vmem:[#allocation2 + $0x30] sm:$0xff]
    %v561 = vld [vmem:[#allocation2 + $0x38] sm:$0xff]
    %v563 = vsel %vm341, %v559, 0
    %565 = vmatprep.subr.mxu0 %v28
    %566 = vmatpush1.msra.mxu0 %v27
    %567 = vmatprep.subr.mxu0 %v30
    %568 = vmatpush1.msra.mxu0 %v29
    %569 = vmatprep.subr.mxu0 %v32
    %570 = vmatpush1.msra.mxu0 %v31
    %571 = vmatprep.subr.mxu0 %v34
    %572 = vmatpush1.msra.mxu0 %v33
    %573 = vmatprep.subr.mxu0 %v36
    %574 = vmatpush1.msra.mxu0 %v35
    %575 = vmatprep.subr.mxu0 %v38
    %576 = vmatpush1.msra.mxu0 %v37
    %577 = vmatprep.subr.mxu0 %v40
    %578 = vmatpush1.msra.mxu0 %v39
    %579 = vmatprep.subr.mxu0 %v42
    %580 = vmatpush1.msra.mxu0 %v41
    %581 = vmatprep.subr.mxu0 0.0
    %582 = vmatpush1.msra.mxu0 0.0
    %583 = vmatprep.subr.mxu0 0.0
    %584 = vmatpush1.msra.mxu0 0.0
    %585 = vmatprep.subr.mxu0 0.0
    %586 = vmatpush1.msra.mxu0 0.0
    %587 = vmatprep.subr.mxu0 0.0
    %588 = vmatpush1.msra.mxu0 0.0
    %589 = vmatprep.subr.mxu0 0.0
    %590 = vmatpush1.msra.mxu0 0.0
    %591 = vmatprep.subr.mxu0 0.0
    %592 = vmatpush1.msra.mxu0 0.0
    %593 = vmatprep.subr.mxu0 0.0
    %594 = vmatpush1.msra.mxu0 0.0
    %595 = vmatprep.subr.mxu0 0.0
    %596 = vmatpush1.msra.mxu0 0.0
    %597 = vmatprep.subr.mxu0 0.0
    %598 = vmatpush1.msra.mxu0 0.0
    %599 = vmatprep.subr.mxu0 0.0
    %600 = vmatpush1.msra.mxu0 0.0
    %601 = vmatprep.subr.mxu0 0.0
    %602 = vmatpush1.msra.mxu0 0.0
    %603 = vmatprep.subr.mxu0 0.0
    %604 = vmatpush1.msra.mxu0 0.0
    %605 = vmatprep.subr.mxu0 0.0
    %606 = vmatpush1.msra.mxu0 0.0
    %607 = vmatprep.subr.mxu0 0.0
    %608 = vmatpush1.msra.mxu0 0.0
    %609 = vmatprep.subr.mxu0 0.0
    %610 = vmatpush1.msra.mxu0 0.0
    %611 = vmatprep.subr.mxu0 0.0
    %612 = vmatpush1.msra.mxu0 0.0
    %613 = vmatprep.subr.mxu0 0.0
    %614 = vmatpush1.msra.mxu0 0.0
    %615 = vmatprep.subr.mxu0 0.0
    %616 = vmatpush1.msra.mxu0 0.0
    %617 = vmatprep.subr.mxu0 0.0
    %618 = vmatpush1.msra.mxu0 0.0
    %619 = vmatprep.subr.mxu0 0.0
    %620 = vmatpush1.msra.mxu0 0.0
    %621 = vmatprep.subr.mxu0 0.0
    %622 = vmatpush1.msra.mxu0 0.0
    %623 = vmatprep.subr.mxu0 0.0
    %624 = vmatpush1.msra.mxu0 0.0
    %625 = vmatprep.subr.mxu0 0.0
    %626 = vmatpush1.msra.mxu0 0.0
    %627 = vmatprep.subr.mxu0 0.0
    %628 = vmatpush1.msra.mxu0 0.0
    %629 = vmatprep.mubr.f32.mxu0 0.0
    %630 = vmatmul.mubr.f32.gmra.mrb[0].mxu0 %v563
    %v631 = vpop.f32.mrb[0].mxu0
    %v632 = vadd.f32 0.0, %v631
    %v633 = vpop.f32.mrb[0].mxu0
    %v634 = vadd.f32 0.0, %v633
    %635 = vdwg.mxu0
    %v636 = vadd.f32 %v560, %v632
    %v637 = vadd.f32 %v561, %v634
    %v638 = vxor.u32 %v636, 2147483648
    %v639 = vxor.u32 %v637, 2147483648
    %v640 = vmul.f32 %v638, 1.442695
    %v641 = vpow.pop %v640
    %v642 = vmul.f32 %v639, 1.442695
    %v643 = vpow.pop %v642
    %v644 = vadd.f32 %v641, 1.0
    %v645 = vadd.f32 %v643, 1.0
    %v646 = vrcp.pop %v644
    %v647 = vmul.f32 1.0, %v646
    %v648 = vrcp.pop %v645
    %v649 = vmul.f32 1.0, %v648
    %v650 = vtanh.pop %v637
    %v651 = vmul.f32 %v647, %v553
    %653 = vrot.lane.b32.xlu0 %v650, 64
    %v654 = vpop.permute.xlu0 %653
    %v656 = vmul.f32 %v647, %v654
    %658 = vrot.lane.b32.xlu0 %v656, 64
    %v659 = vpop.permute.xlu0 %658
    %v661 = vadd.f32 %v651, %v659
    %v662 = vtanh.pop %v661
    %664 = vrot.lane.b32.xlu0 %v662, 64
    %v665 = vpop.permute.xlu0 %664
    %v667 = vmul.f32 %v649, %v665
    %v668 = vld [vmem:[#allocation2 + $0x40] sm:$0xff]
    %v669 = vld [vmem:[#allocation2 + $0x48] sm:$0xff]
    %v671 = vsel %vm341, %v667, 0
    %673 = vmatprep.subr.mxu0 %v28
    %674 = vmatpush1.msra.mxu0 %v27
    %675 = vmatprep.subr.mxu0 %v30
    %676 = vmatpush1.msra.mxu0 %v29
    %677 = vmatprep.subr.mxu0 %v32
    %678 = vmatpush1.msra.mxu0 %v31
    %679 = vmatprep.subr.mxu0 %v34
    %680 = vmatpush1.msra.mxu0 %v33
    %681 = vmatprep.subr.mxu0 %v36
    %682 = vmatpush1.msra.mxu0 %v35
    %683 = vmatprep.subr.mxu0 %v38
    %684 = vmatpush1.msra.mxu0 %v37
    %685 = vmatprep.subr.mxu0 %v40
    %686 = vmatpush1.msra.mxu0 %v39
    %687 = vmatprep.subr.mxu0 %v42
    %688 = vmatpush1.msra.mxu0 %v41
    %689 = vmatprep.subr.mxu0 0.0
    %690 = vmatpush1.msra.mxu0 0.0
    %691 = vmatprep.subr.mxu0 0.0
    %692 = vmatpush1.msra.mxu0 0.0
    %693 = vmatprep.subr.mxu0 0.0
    %694 = vmatpush1.msra.mxu0 0.0
    %695 = vmatprep.subr.mxu0 0.0
    %696 = vmatpush1.msra.mxu0 0.0
    %697 = vmatprep.subr.mxu0 0.0
    %698 = vmatpush1.msra.mxu0 0.0
    %699 = vmatprep.subr.mxu0 0.0
    %700 = vmatpush1.msra.mxu0 0.0
    %701 = vmatprep.subr.mxu0 0.0
    %702 = vmatpush1.msra.mxu0 0.0
    %703 = vmatprep.subr.mxu0 0.0
    %704 = vmatpush1.msra.mxu0 0.0
    %705 = vmatprep.subr.mxu0 0.0
    %706 = vmatpush1.msra.mxu0 0.0
    %707 = vmatprep.subr.mxu0 0.0
    %708 = vmatpush1.msra.mxu0 0.0
    %709 = vmatprep.subr.mxu0 0.0
    %710 = vmatpush1.msra.mxu0 0.0
    %711 = vmatprep.subr.mxu0 0.0
    %712 = vmatpush1.msra.mxu0 0.0
    %713 = vmatprep.subr.mxu0 0.0
    %714 = vmatpush1.msra.mxu0 0.0
    %715 = vmatprep.subr.mxu0 0.0
    %716 = vmatpush1.msra.mxu0 0.0
    %717 = vmatprep.subr.mxu0 0.0
    %718 = vmatpush1.msra.mxu0 0.0
    %719 = vmatprep.subr.mxu0 0.0
    %720 = vmatpush1.msra.mxu0 0.0
    %721 = vmatprep.subr.mxu0 0.0
    %722 = vmatpush1.msra.mxu0 0.0
    %723 = vmatprep.subr.mxu0 0.0
    %724 = vmatpush1.msra.mxu0 0.0
    %725 = vmatprep.subr.mxu0 0.0
    %726 = vmatpush1.msra.mxu0 0.0
    %727 = vmatprep.subr.mxu0 0.0
    %728 = vmatpush1.msra.mxu0 0.0
    %729 = vmatprep.subr.mxu0 0.0
    %730 = vmatpush1.msra.mxu0 0.0
    %731 = vmatprep.subr.mxu0 0.0
    %732 = vmatpush1.msra.mxu0 0.0
    %733 = vmatprep.subr.mxu0 0.0
    %734 = vmatpush1.msra.mxu0 0.0
    %735 = vmatprep.subr.mxu0 0.0
    %736 = vmatpush1.msra.mxu0 0.0
    %737 = vmatprep.mubr.f32.mxu0 0.0
    %738 = vmatmul.mubr.f32.gmra.mrb[0].mxu0 %v671
    %v739 = vpop.f32.mrb[0].mxu0
    %v740 = vadd.f32 0.0, %v739
    %v741 = vpop.f32.mrb[0].mxu0
    %v742 = vadd.f32 0.0, %v741
    %743 = vdwg.mxu0
    %v744 = vadd.f32 %v668, %v740
    %v745 = vadd.f32 %v669, %v742
    %v746 = vxor.u32 %v744, 2147483648
    %v747 = vxor.u32 %v745, 2147483648
    %v748 = vmul.f32 %v746, 1.442695
    %v749 = vpow.pop %v748
    %v750 = vmul.f32 %v747, 1.442695
    %v751 = vpow.pop %v750
    %v752 = vadd.f32 %v749, 1.0
    %v753 = vadd.f32 %v751, 1.0
    %v754 = vrcp.pop %v752
    %v755 = vmul.f32 1.0, %v754
    %v756 = vrcp.pop %v753
    %v757 = vmul.f32 1.0, %v756
    %v758 = vtanh.pop %v745
    %v759 = vmul.f32 %v755, %v661
    %761 = vrot.lane.b32.xlu0 %v758, 64
    %v762 = vpop.permute.xlu0 %761
    %v764 = vmul.f32 %v755, %v762
    %766 = vrot.lane.b32.xlu0 %v764, 64
    %v767 = vpop.permute.xlu0 %766
    %v769 = vadd.f32 %v759, %v767
    %v770 = vtanh.pop %v769
    %772 = vrot.lane.b32.xlu0 %v770, 64
    %v773 = vpop.permute.xlu0 %772
    %v775 = vmul.f32 %v757, %v773
    %v776 = vld [vmem:[#allocation2 + $0x50] sm:$0xff]
    %v777 = vld [vmem:[#allocation2 + $0x58] sm:$0xff]
    %v779 = vsel %vm341, %v775, 0
    %781 = vmatprep.subr.mxu0 %v28
    %782 = vmatpush1.msra.mxu0 %v27
    %783 = vmatprep.subr.mxu0 %v30
    %784 = vmatpush1.msra.mxu0 %v29
    %785 = vmatprep.subr.mxu0 %v32
    %786 = vmatpush1.msra.mxu0 %v31
    %787 = vmatprep.subr.mxu0 %v34
    %788 = vmatpush1.msra.mxu0 %v33
    %789 = vmatprep.subr.mxu0 %v36
    %790 = vmatpush1.msra.mxu0 %v35
    %791 = vmatprep.subr.mxu0 %v38
    %792 = vmatpush1.msra.mxu0 %v37
    %793 = vmatprep.subr.mxu0 %v40
    %794 = vmatpush1.msra.mxu0 %v39
    %795 = vmatprep.subr.mxu0 %v42
    %796 = vmatpush1.msra.mxu0 %v41
    %797 = vmatprep.subr.mxu0 0.0
    %798 = vmatpush1.msra.mxu0 0.0
    %799 = vmatprep.subr.mxu0 0.0
    %800 = vmatpush1.msra.mxu0 0.0
    %801 = vmatprep.subr.mxu0 0.0
    %802 = vmatpush1.msra.mxu0 0.0
    %803 = vmatprep.subr.mxu0 0.0
    %804 = vmatpush1.msra.mxu0 0.0
    %805 = vmatprep.subr.mxu0 0.0
    %806 = vmatpush1.msra.mxu0 0.0
    %807 = vmatprep.subr.mxu0 0.0
    %808 = vmatpush1.msra.mxu0 0.0
    %809 = vmatprep.subr.mxu0 0.0
    %810 = vmatpush1.msra.mxu0 0.0
    %811 = vmatprep.subr.mxu0 0.0
    %812 = vmatpush1.msra.mxu0 0.0
    %813 = vmatprep.subr.mxu0 0.0
    %814 = vmatpush1.msra.mxu0 0.0
    %815 = vmatprep.subr.mxu0 0.0
    %816 = vmatpush1.msra.mxu0 0.0
    %817 = vmatprep.subr.mxu0 0.0
    %818 = vmatpush1.msra.mxu0 0.0
    %819 = vmatprep.subr.mxu0 0.0
    %820 = vmatpush1.msra.mxu0 0.0
    %821 = vmatprep.subr.mxu0 0.0
    %822 = vmatpush1.msra.mxu0 0.0
    %823 = vmatprep.subr.mxu0 0.0
    %824 = vmatpush1.msra.mxu0 0.0
    %825 = vmatprep.subr.mxu0 0.0
    %826 = vmatpush1.msra.mxu0 0.0
    %827 = vmatprep.subr.mxu0 0.0
    %828 = vmatpush1.msra.mxu0 0.0
    %829 = vmatprep.subr.mxu0 0.0
    %830 = vmatpush1.msra.mxu0 0.0
    %831 = vmatprep.subr.mxu0 0.0
    %832 = vmatpush1.msra.mxu0 0.0
    %833 = vmatprep.subr.mxu0 0.0
    %834 = vmatpush1.msra.mxu0 0.0
    %835 = vmatprep.subr.mxu0 0.0
    %836 = vmatpush1.msra.mxu0 0.0
    %837 = vmatprep.subr.mxu0 0.0
    %838 = vmatpush1.msra.mxu0 0.0
    %839 = vmatprep.subr.mxu0 0.0
    %840 = vmatpush1.msra.mxu0 0.0
    %841 = vmatprep.subr.mxu0 0.0
    %842 = vmatpush1.msra.mxu0 0.0
    %843 = vmatprep.subr.mxu0 0.0
    %844 = vmatpush1.msra.mxu0 0.0
    %845 = vmatprep.mubr.f32.mxu0 0.0
    %846 = vmatmul.mubr.f32.gmra.mrb[0].mxu0 %v779
    %v847 = vpop.f32.mrb[0].mxu0
    %v848 = vadd.f32 0.0, %v847
    %v849 = vpop.f32.mrb[0].mxu0
    %v850 = vadd.f32 0.0, %v849
    %851 = vdwg.mxu0
    %v852 = vadd.f32 %v776, %v848
    %v853 = vadd.f32 %v777, %v850
    %v854 = vxor.u32 %v852, 2147483648
    %v855 = vxor.u32 %v853, 2147483648
    %v856 = vmul.f32 %v854, 1.442695
    %v857 = vpow.pop %v856
    %v858 = vmul.f32 %v855, 1.442695
    %v859 = vpow.pop %v858
    %v860 = vadd.f32 %v857, 1.0
    %v861 = vadd.f32 %v859, 1.0
    %v862 = vrcp.pop %v860
    %v863 = vmul.f32 1.0, %v862
    %v864 = vrcp.pop %v861
    %v865 = vmul.f32 1.0, %v864
    %v866 = vtanh.pop %v853
    %v867 = vmul.f32 %v863, %v769
    %869 = vrot.lane.b32.xlu0 %v866, 64
    %v870 = vpop.permute.xlu0 %869
    %v872 = vmul.f32 %v863, %v870
    %874 = vrot.lane.b32.xlu0 %v872, 64
    %v875 = vpop.permute.xlu0 %874
    %v877 = vadd.f32 %v867, %v875
    %v878 = vtanh.pop %v877
    %880 = vrot.lane.b32.xlu0 %v878, 64
    %v881 = vpop.permute.xlu0 %880
    %v883 = vmul.f32 %v865, %v881
    %v884 = vld [vmem:[#allocation2 + $0x60] sm:$0xff]
    %v885 = vld [vmem:[#allocation2 + $0x68] sm:$0xff]
    %v887 = vsel %vm341, %v883, 0
    %889 = vmatprep.subr.mxu0 %v28
    %890 = vmatpush1.msra.mxu0 %v27
    %891 = vmatprep.subr.mxu0 %v30
    %892 = vmatpush1.msra.mxu0 %v29
    %893 = vmatprep.subr.mxu0 %v32
    %894 = vmatpush1.msra.mxu0 %v31
    %895 = vmatprep.subr.mxu0 %v34
    %896 = vmatpush1.msra.mxu0 %v33
    %897 = vmatprep.subr.mxu0 %v36
    %898 = vmatpush1.msra.mxu0 %v35
    %899 = vmatprep.subr.mxu0 %v38
    %900 = vmatpush1.msra.mxu0 %v37
    %901 = vmatprep.subr.mxu0 %v40
    %902 = vmatpush1.msra.mxu0 %v39
    %903 = vmatprep.subr.mxu0 %v42
    %904 = vmatpush1.msra.mxu0 %v41
    %905 = vmatprep.subr.mxu0 0.0
    %906 = vmatpush1.msra.mxu0 0.0
    %907 = vmatprep.subr.mxu0 0.0
    %908 = vmatpush1.msra.mxu0 0.0
    %909 = vmatprep.subr.mxu0 0.0
    %910 = vmatpush1.msra.mxu0 0.0
    %911 = vmatprep.subr.mxu0 0.0
    %912 = vmatpush1.msra.mxu0 0.0
    %913 = vmatprep.subr.mxu0 0.0
    %914 = vmatpush1.msra.mxu0 0.0
    %915 = vmatprep.subr.mxu0 0.0
    %916 = vmatpush1.msra.mxu0 0.0
    %917 = vmatprep.subr.mxu0 0.0
    %918 = vmatpush1.msra.mxu0 0.0
    %919 = vmatprep.subr.mxu0 0.0
    %920 = vmatpush1.msra.mxu0 0.0
    %921 = vmatprep.subr.mxu0 0.0
    %922 = vmatpush1.msra.mxu0 0.0
    %923 = vmatprep.subr.mxu0 0.0
    %924 = vmatpush1.msra.mxu0 0.0
    %925 = vmatprep.subr.mxu0 0.0
    %926 = vmatpush1.msra.mxu0 0.0
    %927 = vmatprep.subr.mxu0 0.0
    %928 = vmatpush1.msra.mxu0 0.0
    %929 = vmatprep.subr.mxu0 0.0
    %930 = vmatpush1.msra.mxu0 0.0
    %931 = vmatprep.subr.mxu0 0.0
    %932 = vmatpush1.msra.mxu0 0.0
    %933 = vmatprep.subr.mxu0 0.0
    %934 = vmatpush1.msra.mxu0 0.0
    %935 = vmatprep.subr.mxu0 0.0
    %936 = vmatpush1.msra.mxu0 0.0
    %937 = vmatprep.subr.mxu0 0.0
    %938 = vmatpush1.msra.mxu0 0.0
    %939 = vmatprep.subr.mxu0 0.0
    %940 = vmatpush1.msra.mxu0 0.0
    %941 = vmatprep.subr.mxu0 0.0
    %942 = vmatpush1.msra.mxu0 0.0
    %943 = vmatprep.subr.mxu0 0.0
    %944 = vmatpush1.msra.mxu0 0.0
    %945 = vmatprep.subr.mxu0 0.0
    %946 = vmatpush1.msra.mxu0 0.0
    %947 = vmatprep.subr.mxu0 0.0
    %948 = vmatpush1.msra.mxu0 0.0
    %949 = vmatprep.subr.mxu0 0.0
    %950 = vmatpush1.msra.mxu0 0.0
    %951 = vmatprep.subr.mxu0 0.0
    %952 = vmatpush1.msra.mxu0 0.0
    %953 = vmatprep.mubr.f32.mxu0 0.0
    %954 = vmatmul.mubr.f32.gmra.mrb[0].mxu0 %v887
    %v955 = vpop.f32.mrb[0].mxu0
    %v956 = vadd.f32 0.0, %v955
    %v957 = vpop.f32.mrb[0].mxu0
    %v958 = vadd.f32 0.0, %v957
    %959 = vdwg.mxu0
    %v960 = vadd.f32 %v884, %v956
    %v961 = vadd.f32 %v885, %v958
    %v962 = vxor.u32 %v960, 2147483648
    %v963 = vxor.u32 %v961, 2147483648
    %v964 = vmul.f32 %v962, 1.442695
    %v965 = vpow.pop %v964
    %v966 = vmul.f32 %v963, 1.442695
    %v967 = vpow.pop %v966
    %v968 = vadd.f32 %v965, 1.0
    %v969 = vadd.f32 %v967, 1.0
    %v970 = vrcp.pop %v968
    %v971 = vmul.f32 1.0, %v970
    %v972 = vrcp.pop %v969
    %v973 = vmul.f32 1.0, %v972
    %v974 = vtanh.pop %v961
    %v975 = vmul.f32 %v971, %v877
    %977 = vrot.lane.b32.xlu0 %v974, 64
    %v978 = vpop.permute.xlu0 %977
    %v980 = vmul.f32 %v971, %v978
    %982 = vrot.lane.b32.xlu0 %v980, 64
    %v983 = vpop.permute.xlu0 %982
    %v985 = vadd.f32 %v975, %v983
    %v986 = vtanh.pop %v985
    %988 = vrot.lane.b32.xlu0 %v986, 64
    %v989 = vpop.permute.xlu0 %988
    %v991 = vmul.f32 %v973, %v989
    %v992 = vld [vmem:[#allocation2 + $0x70] sm:$0xff]
    %v993 = vld [vmem:[#allocation2 + $0x78] sm:$0xff]
    %v995 = vsel %vm341, %v991, 0
    %997 = vmatprep.subr.mxu0 %v28
    %998 = vmatpush1.msra.mxu0 %v27
    %999 = vmatprep.subr.mxu0 %v30
    %1000 = vmatpush1.msra.mxu0 %v29
    %1001 = vmatprep.subr.mxu0 %v32
    %1002 = vmatpush1.msra.mxu0 %v31
    %1003 = vmatprep.subr.mxu0 %v34
    %1004 = vmatpush1.msra.mxu0 %v33
    %1005 = vmatprep.subr.mxu0 %v36
    %1006 = vmatpush1.msra.mxu0 %v35
    %1007 = vmatprep.subr.mxu0 %v38
    %1008 = vmatpush1.msra.mxu0 %v37
    %1009 = vmatprep.subr.mxu0 %v40
    %1010 = vmatpush1.msra.mxu0 %v39
    %1011 = vmatprep.subr.mxu0 %v42
    %1012 = vmatpush1.msra.mxu0 %v41
    %1013 = vmatprep.subr.mxu0 0.0
    %1014 = vmatpush1.msra.mxu0 0.0
    %1015 = vmatprep.subr.mxu0 0.0
    %1016 = vmatpush1.msra.mxu0 0.0
    %1017 = vmatprep.subr.mxu0 0.0
    %1018 = vmatpush1.msra.mxu0 0.0
    %1019 = vmatprep.subr.mxu0 0.0
    %1020 = vmatpush1.msra.mxu0 0.0
    %1021 = vmatprep.subr.mxu0 0.0
    %1022 = vmatpush1.msra.mxu0 0.0
    %1023 = vmatprep.subr.mxu0 0.0
    %1024 = vmatpush1.msra.mxu0 0.0
    %1025 = vmatprep.subr.mxu0 0.0
    %1026 = vmatpush1.msra.mxu0 0.0
    %1027 = vmatprep.subr.mxu0 0.0
    %1028 = vmatpush1.msra.mxu0 0.0
    %1029 = vmatprep.subr.mxu0 0.0
    %1030 = vmatpush1.msra.mxu0 0.0
    %1031 = vmatprep.subr.mxu0 0.0
    %1032 = vmatpush1.msra.mxu0 0.0
    %1033 = vmatprep.subr.mxu0 0.0
    %1034 = vmatpush1.msra.mxu0 0.0
    %1035 = vmatprep.subr.mxu0 0.0
    %1036 = vmatpush1.msra.mxu0 0.0
    %1037 = vmatprep.subr.mxu0 0.0
    %1038 = vmatpush1.msra.mxu0 0.0
    %1039 = vmatprep.subr.mxu0 0.0
    %1040 = vmatpush1.msra.mxu0 0.0
    %1041 = vmatprep.subr.mxu0 0.0
    %1042 = vmatpush1.msra.mxu0 0.0
    %1043 = vmatprep.subr.mxu0 0.0
    %1044 = vmatpush1.msra.mxu0 0.0
    %1045 = vmatprep.subr.mxu0 0.0
    %1046 = vmatpush1.msra.mxu0 0.0
    %1047 = vmatprep.subr.mxu0 0.0
    %1048 = vmatpush1.msra.mxu0 0.0
    %1049 = vmatprep.subr.mxu0 0.0
    %1050 = vmatpush1.msra.mxu0 0.0
    %1051 = vmatprep.subr.mxu0 0.0
    %1052 = vmatpush1.msra.mxu0 0.0
    %1053 = vmatprep.subr.mxu0 0.0
    %1054 = vmatpush1.msra.mxu0 0.0
    %1055 = vmatprep.subr.mxu0 0.0
    %1056 = vmatpush1.msra.mxu0 0.0
    %1057 = vmatprep.subr.mxu0 0.0
    %1058 = vmatpush1.msra.mxu0 0.0
    %1059 = vmatprep.subr.mxu0 0.0
    %1060 = vmatpush1.msra.mxu0 0.0
    %1061 = vmatprep.mubr.f32.mxu0 0.0
    %1062 = vmatmul.mubr.f32.gmra.mrb[0].mxu0 %v995
    %v1063 = vpop.f32.mrb[0].mxu0
    %v1064 = vadd.f32 0.0, %v1063
    %v1065 = vpop.f32.mrb[0].mxu0
    %v1066 = vadd.f32 0.0, %v1065
    %1067 = vdwg.mxu0
    %v1068 = vadd.f32 %v992, %v1064
    %v1069 = vadd.f32 %v993, %v1066
    %v1070 = vxor.u32 %v1068, 2147483648
    %v1071 = vxor.u32 %v1069, 2147483648
    %v1072 = vmul.f32 %v1070, 1.442695
    %v1073 = vpow.pop %v1072
    %v1074 = vmul.f32 %v1071, 1.442695
    %v1075 = vpow.pop %v1074
    %v1076 = vadd.f32 %v1073, 1.0
    %v1077 = vadd.f32 %v1075, 1.0
    %v1078 = vrcp.pop %v1076
    %v1079 = vmul.f32 1.0, %v1078
    %v1080 = vrcp.pop %v1077
    %v1081 = vmul.f32 1.0, %v1080
    %v1082 = vtanh.pop %v1069
    %v1083 = vmul.f32 %v1079, %v985
    %1085 = vrot.lane.b32.xlu0 %v1082, 64
    %v1086 = vpop.permute.xlu0 %1085
    %v1088 = vmul.f32 %v1079, %v1086
    %1090 = vrot.lane.b32.xlu0 %v1088, 64
    %v1091 = vpop.permute.xlu0 %1090
    %v1093 = vadd.f32 %v1083, %v1091
    %v1094 = vtanh.pop %v1093
    %1096 = vrot.lane.b32.xlu0 %v1094, 64
    %v1097 = vpop.permute.xlu0 %1096
    %v1099 = vmul.f32 %v1081, %v1097
    %v1100 = vld [vmem:[#allocation2 + $0x80] sm:$0xff]
    %v1101 = vld [vmem:[#allocation2 + $0x88] sm:$0xff]
    %v1103 = vsel %vm341, %v1099, 0
    %1105 = vmatprep.subr.mxu0 %v28
    %1106 = vmatpush1.msra.mxu0 %v27
    %1107 = vmatprep.subr.mxu0 %v30
    %1108 = vmatpush1.msra.mxu0 %v29
    %1109 = vmatprep.subr.mxu0 %v32
    %1110 = vmatpush1.msra.mxu0 %v31
    %1111 = vmatprep.subr.mxu0 %v34
    %1112 = vmatpush1.msra.mxu0 %v33
    %1113 = vmatprep.subr.mxu0 %v36
    %1114 = vmatpush1.msra.mxu0 %v35
    %1115 = vmatprep.subr.mxu0 %v38
    %1116 = vmatpush1.msra.mxu0 %v37
    %1117 = vmatprep.subr.mxu0 %v40
    %1118 = vmatpush1.msra.mxu0 %v39
    %1119 = vmatprep.subr.mxu0 %v42
    %1120 = vmatpush1.msra.mxu0 %v41
    %1121 = vmatprep.subr.mxu0 0.0
    %1122 = vmatpush1.msra.mxu0 0.0
    %1123 = vmatprep.subr.mxu0 0.0
    %1124 = vmatpush1.msra.mxu0 0.0
    %1125 = vmatprep.subr.mxu0 0.0
    %1126 = vmatpush1.msra.mxu0 0.0
    %1127 = vmatprep.subr.mxu0 0.0
    %1128 = vmatpush1.msra.mxu0 0.0
    %1129 = vmatprep.subr.mxu0 0.0
    %1130 = vmatpush1.msra.mxu0 0.0
    %1131 = vmatprep.subr.mxu0 0.0
    %1132 = vmatpush1.msra.mxu0 0.0
    %1133 = vmatprep.subr.mxu0 0.0
    %1134 = vmatpush1.msra.mxu0 0.0
    %1135 = vmatprep.subr.mxu0 0.0
    %1136 = vmatpush1.msra.mxu0 0.0
    %1137 = vmatprep.subr.mxu0 0.0
    %1138 = vmatpush1.msra.mxu0 0.0
    %1139 = vmatprep.subr.mxu0 0.0
    %1140 = vmatpush1.msra.mxu0 0.0
    %1141 = vmatprep.subr.mxu0 0.0
    %1142 = vmatpush1.msra.mxu0 0.0
    %1143 = vmatprep.subr.mxu0 0.0
    %1144 = vmatpush1.msra.mxu0 0.0
    %1145 = vmatprep.subr.mxu0 0.0
    %1146 = vmatpush1.msra.mxu0 0.0
    %1147 = vmatprep.subr.mxu0 0.0
    %1148 = vmatpush1.msra.mxu0 0.0
    %1149 = vmatprep.subr.mxu0 0.0
    %1150 = vmatpush1.msra.mxu0 0.0
    %1151 = vmatprep.subr.mxu0 0.0
    %1152 = vmatpush1.msra.mxu0 0.0
    %1153 = vmatprep.subr.mxu0 0.0
    %1154 = vmatpush1.msra.mxu0 0.0
    %1155 = vmatprep.subr.mxu0 0.0
    %1156 = vmatpush1.msra.mxu0 0.0
    %1157 = vmatprep.subr.mxu0 0.0
    %1158 = vmatpush1.msra.mxu0 0.0
    %1159 = vmatprep.subr.mxu0 0.0
    %1160 = vmatpush1.msra.mxu0 0.0
    %1161 = vmatprep.subr.mxu0 0.0
    %1162 = vmatpush1.msra.mxu0 0.0
    %1163 = vmatprep.subr.mxu0 0.0
    %1164 = vmatpush1.msra.mxu0 0.0
    %1165 = vmatprep.subr.mxu0 0.0
    %1166 = vmatpush1.msra.mxu0 0.0
    %1167 = vmatprep.subr.mxu0 0.0
    %1168 = vmatpush1.msra.mxu0 0.0
    %1169 = vmatprep.mubr.f32.mxu0 0.0
    %1170 = vmatmul.mubr.f32.gmra.mrb[0].mxu0 %v1103
    %v1171 = vpop.f32.mrb[0].mxu0
    %v1172 = vadd.f32 0.0, %v1171
    %v1173 = vpop.f32.mrb[0].mxu0
    %v1174 = vadd.f32 0.0, %v1173
    %1175 = vdwg.mxu0
    %v1176 = vadd.f32 %v1100, %v1172
    %v1177 = vadd.f32 %v1101, %v1174
    %v1178 = vxor.u32 %v1176, 2147483648
    %v1179 = vxor.u32 %v1177, 2147483648
    %v1180 = vmul.f32 %v1178, 1.442695
    %v1181 = vpow.pop %v1180
    %v1182 = vmul.f32 %v1179, 1.442695
    %v1183 = vpow.pop %v1182
    %v1184 = vadd.f32 %v1181, 1.0
    %v1185 = vadd.f32 %v1183, 1.0
    %v1186 = vrcp.pop %v1184
    %v1187 = vmul.f32 1.0, %v1186
    %v1188 = vrcp.pop %v1185
    %v1189 = vmul.f32 1.0, %v1188
    %v1190 = vtanh.pop %v1177
    %v1191 = vmul.f32 %v1187, %v1093
    %1193 = vrot.lane.b32.xlu0 %v1190, 64
    %v1194 = vpop.permute.xlu0 %1193
    %v1196 = vmul.f32 %v1187, %v1194
    %1198 = vrot.lane.b32.xlu0 %v1196, 64
    %v1199 = vpop.permute.xlu0 %1198
    %v1201 = vadd.f32 %v1191, %v1199
    %v1202 = vtanh.pop %v1201
    %1204 = vrot.lane.b32.xlu0 %v1202, 64
    %v1205 = vpop.permute.xlu0 %1204
    %v1207 = vmul.f32 %v1189, %v1205
    %v1208 = vld [vmem:[#allocation2 + $0x90] sm:$0xff]
    %v1209 = vld [vmem:[#allocation2 + $0x98] sm:$0xff]
    %v1211 = vsel %vm341, %v1207, 0
    %1213 = vmatprep.subr.mxu0 %v28
    %1214 = vmatpush1.msra.mxu0 %v27
    %1215 = vmatprep.subr.mxu0 %v30
    %1216 = vmatpush1.msra.mxu0 %v29
    %1217 = vmatprep.subr.mxu0 %v32
    %1218 = vmatpush1.msra.mxu0 %v31
    %1219 = vmatprep.subr.mxu0 %v34
    %1220 = vmatpush1.msra.mxu0 %v33
    %1221 = vmatprep.subr.mxu0 %v36
    %1222 = vmatpush1.msra.mxu0 %v35
    %1223 = vmatprep.subr.mxu0 %v38
    %1224 = vmatpush1.msra.mxu0 %v37
    %1225 = vmatprep.subr.mxu0 %v40
    %1226 = vmatpush1.msra.mxu0 %v39
    %1227 = vmatprep.subr.mxu0 %v42
    %1228 = vmatpush1.msra.mxu0 %v41
    %1229 = vmatprep.subr.mxu0 0.0
    %1230 = vmatpush1.msra.mxu0 0.0
    %1231 = vmatprep.subr.mxu0 0.0
    %1232 = vmatpush1.msra.mxu0 0.0
    %1233 = vmatprep.subr.mxu0 0.0
    %1234 = vmatpush1.msra.mxu0 0.0
    %1235 = vmatprep.subr.mxu0 0.0
    %1236 = vmatpush1.msra.mxu0 0.0
    %1237 = vmatprep.subr.mxu0 0.0
    %1238 = vmatpush1.msra.mxu0 0.0
    %1239 = vmatprep.subr.mxu0 0.0
    %1240 = vmatpush1.msra.mxu0 0.0
    %1241 = vmatprep.subr.mxu0 0.0
    %1242 = vmatpush1.msra.mxu0 0.0
    %1243 = vmatprep.subr.mxu0 0.0
    %1244 = vmatpush1.msra.mxu0 0.0
    %1245 = vmatprep.subr.mxu0 0.0
    %1246 = vmatpush1.msra.mxu0 0.0
    %1247 = vmatprep.subr.mxu0 0.0
    %1248 = vmatpush1.msra.mxu0 0.0
    %1249 = vmatprep.subr.mxu0 0.0
    %1250 = vmatpush1.msra.mxu0 0.0
    %1251 = vmatprep.subr.mxu0 0.0
    %1252 = vmatpush1.msra.mxu0 0.0
    %1253 = vmatprep.subr.mxu0 0.0
    %1254 = vmatpush1.msra.mxu0 0.0
    %1255 = vmatprep.subr.mxu0 0.0
    %1256 = vmatpush1.msra.mxu0 0.0
    %1257 = vmatprep.subr.mxu0 0.0
    %1258 = vmatpush1.msra.mxu0 0.0
    %1259 = vmatprep.subr.mxu0 0.0
    %1260 = vmatpush1.msra.mxu0 0.0
    %1261 = vmatprep.subr.mxu0 0.0
    %1262 = vmatpush1.msra.mxu0 0.0
    %1263 = vmatprep.subr.mxu0 0.0
    %1264 = vmatpush1.msra.mxu0 0.0
    %1265 = vmatprep.subr.mxu0 0.0
    %1266 = vmatpush1.msra.mxu0 0.0
    %1267 = vmatprep.subr.mxu0 0.0
    %1268 = vmatpush1.msra.mxu0 0.0
    %1269 = vmatprep.subr.mxu0 0.0
    %1270 = vmatpush1.msra.mxu0 0.0
    %1271 = vmatprep.subr.mxu0 0.0
    %1272 = vmatpush1.msra.mxu0 0.0
    %1273 = vmatprep.subr.mxu0 0.0
    %1274 = vmatpush1.msra.mxu0 0.0
    %1275 = vmatprep.subr.mxu0 0.0
    %1276 = vmatpush1.msra.mxu0 0.0
    %1277 = vmatprep.mubr.f32.mxu0 0.0
    %1278 = vmatmul.mubr.f32.gmra.mrb[0].mxu0 %v1211
    %v1279 = vpop.f32.mrb[0].mxu0
    %v1280 = vadd.f32 0.0, %v1279
    %v1281 = vpop.f32.mrb[0].mxu0
    %v1282 = vadd.f32 0.0, %v1281
    %1283 = vdwg.mxu0
    %v1284 = vadd.f32 %v1208, %v1280
    %v1285 = vadd.f32 %v1209, %v1282
    %v1286 = vxor.u32 %v1284, 2147483648
    %v1287 = vxor.u32 %v1285, 2147483648
    %v1288 = vmul.f32 %v1286, 1.442695
    %v1289 = vpow.pop %v1288
    %v1290 = vmul.f32 %v1287, 1.442695
    %v1291 = vpow.pop %v1290
    %v1292 = vadd.f32 %v1289, 1.0
    %v1293 = vadd.f32 %v1291, 1.0
    %v1294 = vrcp.pop %v1292
    %v1295 = vmul.f32 1.0, %v1294
    %v1296 = vrcp.pop %v1293
    %v1297 = vmul.f32 1.0, %v1296
    %v1298 = vtanh.pop %v1285
    %v1299 = vmul.f32 %v1295, %v1201
    %1301 = vrot.lane.b32.xlu0 %v1298, 64
    %v1302 = vpop.permute.xlu0 %1301
    %v1304 = vmul.f32 %v1295, %v1302
    %1306 = vrot.lane.b32.xlu0 %v1304, 64
    %v1307 = vpop.permute.xlu0 %1306
    %v1309 = vadd.f32 %v1299, %v1307
    %v1310 = vtanh.pop %v1309
    %1312 = vrot.lane.b32.xlu0 %v1310, 64
    %v1313 = vpop.permute.xlu0 %1312
    %v1315 = vmul.f32 %v1297, %v1313
    %v1316 = vld [vmem:[#allocation2 + $0xa0] sm:$0xff]
    %v1317 = vld [vmem:[#allocation2 + $0xa8] sm:$0xff]
    %v1319 = vsel %vm341, %v1315, 0
    %1321 = vmatprep.subr.mxu0 %v28
    %1322 = vmatpush1.msra.mxu0 %v27
    %1323 = vmatprep.subr.mxu0 %v30
    %1324 = vmatpush1.msra.mxu0 %v29
    %1325 = vmatprep.subr.mxu0 %v32
    %1326 = vmatpush1.msra.mxu0 %v31
    %1327 = vmatprep.subr.mxu0 %v34
    %1328 = vmatpush1.msra.mxu0 %v33
    %1329 = vmatprep.subr.mxu0 %v36
    %1330 = vmatpush1.msra.mxu0 %v35
    %1331 = vmatprep.subr.mxu0 %v38
    %1332 = vmatpush1.msra.mxu0 %v37
    %1333 = vmatprep.subr.mxu0 %v40
    %1334 = vmatpush1.msra.mxu0 %v39
    %1335 = vmatprep.subr.mxu0 %v42
    %1336 = vmatpush1.msra.mxu0 %v41
    %1337 = vmatprep.subr.mxu0 0.0
    %1338 = vmatpush1.msra.mxu0 0.0
    %1339 = vmatprep.subr.mxu0 0.0
    %1340 = vmatpush1.msra.mxu0 0.0
    %1341 = vmatprep.subr.mxu0 0.0
    %1342 = vmatpush1.msra.mxu0 0.0
    %1343 = vmatprep.subr.mxu0 0.0
    %1344 = vmatpush1.msra.mxu0 0.0
    %1345 = vmatprep.subr.mxu0 0.0
    %1346 = vmatpush1.msra.mxu0 0.0
    %1347 = vmatprep.subr.mxu0 0.0
    %1348 = vmatpush1.msra.mxu0 0.0
    %1349 = vmatprep.subr.mxu0 0.0
    %1350 = vmatpush1.msra.mxu0 0.0
    %1351 = vmatprep.subr.mxu0 0.0
    %1352 = vmatpush1.msra.mxu0 0.0
    %1353 = vmatprep.subr.mxu0 0.0
    %1354 = vmatpush1.msra.mxu0 0.0
    %1355 = vmatprep.subr.mxu0 0.0
    %1356 = vmatpush1.msra.mxu0 0.0
    %1357 = vmatprep.subr.mxu0 0.0
    %1358 = vmatpush1.msra.mxu0 0.0
    %1359 = vmatprep.subr.mxu0 0.0
    %1360 = vmatpush1.msra.mxu0 0.0
    %1361 = vmatprep.subr.mxu0 0.0
    %1362 = vmatpush1.msra.mxu0 0.0
    %1363 = vmatprep.subr.mxu0 0.0
    %1364 = vmatpush1.msra.mxu0 0.0
    %1365 = vmatprep.subr.mxu0 0.0
    %1366 = vmatpush1.msra.mxu0 0.0
    %1367 = vmatprep.subr.mxu0 0.0
    %1368 = vmatpush1.msra.mxu0 0.0
    %1369 = vmatprep.subr.mxu0 0.0
    %1370 = vmatpush1.msra.mxu0 0.0
    %1371 = vmatprep.subr.mxu0 0.0
    %1372 = vmatpush1.msra.mxu0 0.0
    %1373 = vmatprep.subr.mxu0 0.0
    %1374 = vmatpush1.msra.mxu0 0.0
    %1375 = vmatprep.subr.mxu0 0.0
    %1376 = vmatpush1.msra.mxu0 0.0
    %1377 = vmatprep.subr.mxu0 0.0
    %1378 = vmatpush1.msra.mxu0 0.0
    %1379 = vmatprep.subr.mxu0 0.0
    %1380 = vmatpush1.msra.mxu0 0.0
    %1381 = vmatprep.subr.mxu0 0.0
    %1382 = vmatpush1.msra.mxu0 0.0
    %1383 = vmatprep.subr.mxu0 0.0
    %1384 = vmatpush1.msra.mxu0 0.0
    %1385 = vmatprep.mubr.f32.mxu0 0.0
    %1386 = vmatmul.mubr.f32.gmra.mrb[0].mxu0 %v1319
    %v1387 = vpop.f32.mrb[0].mxu0
    %v1388 = vadd.f32 0.0, %v1387
    %v1389 = vpop.f32.mrb[0].mxu0
    %v1390 = vadd.f32 0.0, %v1389
    %1391 = vdwg.mxu0
    %v1392 = vadd.f32 %v1316, %v1388
    %v1393 = vadd.f32 %v1317, %v1390
    %v1394 = vxor.u32 %v1392, 2147483648
    %v1395 = vxor.u32 %v1393, 2147483648
    %v1396 = vmul.f32 %v1394, 1.442695
    %v1397 = vpow.pop %v1396
    %v1398 = vmul.f32 %v1395, 1.442695
    %v1399 = vpow.pop %v1398
    %v1400 = vadd.f32 %v1397, 1.0
    %v1401 = vadd.f32 %v1399, 1.0
    %v1402 = vrcp.pop %v1400
    %v1403 = vmul.f32 1.0, %v1402
    %v1404 = vrcp.pop %v1401
    %v1405 = vmul.f32 1.0, %v1404
    %v1406 = vtanh.pop %v1393
    %v1407 = vmul.f32 %v1403, %v1309
    %1409 = vrot.lane.b32.xlu0 %v1406, 64
    %v1410 = vpop.permute.xlu0 %1409
    %v1412 = vmul.f32 %v1403, %v1410
    %1414 = vrot.lane.b32.xlu0 %v1412, 64
    %v1415 = vpop.permute.xlu0 %1414
    %v1417 = vadd.f32 %v1407, %v1415
    %v1418 = vtanh.pop %v1417
    %1420 = vrot.lane.b32.xlu0 %v1418, 64
    %v1421 = vpop.permute.xlu0 %1420
    %v1423 = vmul.f32 %v1405, %v1421
    %v1424 = vld [vmem:[#allocation2 + $0xb0] sm:$0xff]
    %v1425 = vld [vmem:[#allocation2 + $0xb8] sm:$0xff]
    %v1427 = vsel %vm341, %v1423, 0
    %1429 = vmatprep.subr.mxu0 %v28
    %1430 = vmatpush1.msra.mxu0 %v27
    %1431 = vmatprep.subr.mxu0 %v30
    %1432 = vmatpush1.msra.mxu0 %v29
    %1433 = vmatprep.subr.mxu0 %v32
    %1434 = vmatpush1.msra.mxu0 %v31
    %1435 = vmatprep.subr.mxu0 %v34
    %1436 = vmatpush1.msra.mxu0 %v33
    %1437 = vmatprep.subr.mxu0 %v36
    %1438 = vmatpush1.msra.mxu0 %v35
    %1439 = vmatprep.subr.mxu0 %v38
    %1440 = vmatpush1.msra.mxu0 %v37
    %1441 = vmatprep.subr.mxu0 %v40
    %1442 = vmatpush1.msra.mxu0 %v39
    %1443 = vmatprep.subr.mxu0 %v42
    %1444 = vmatpush1.msra.mxu0 %v41
    %1445 = vmatprep.subr.mxu0 0.0
    %1446 = vmatpush1.msra.mxu0 0.0
    %1447 = vmatprep.subr.mxu0 0.0
    %1448 = vmatpush1.msra.mxu0 0.0
    %1449 = vmatprep.subr.mxu0 0.0
    %1450 = vmatpush1.msra.mxu0 0.0
    %1451 = vmatprep.subr.mxu0 0.0
    %1452 = vmatpush1.msra.mxu0 0.0
    %1453 = vmatprep.subr.mxu0 0.0
    %1454 = vmatpush1.msra.mxu0 0.0
    %1455 = vmatprep.subr.mxu0 0.0
    %1456 = vmatpush1.msra.mxu0 0.0
    %1457 = vmatprep.subr.mxu0 0.0
    %1458 = vmatpush1.msra.mxu0 0.0
    %1459 = vmatprep.subr.mxu0 0.0
    %1460 = vmatpush1.msra.mxu0 0.0
    %1461 = vmatprep.subr.mxu0 0.0
    %1462 = vmatpush1.msra.mxu0 0.0
    %1463 = vmatprep.subr.mxu0 0.0
    %1464 = vmatpush1.msra.mxu0 0.0
    %1465 = vmatprep.subr.mxu0 0.0
    %1466 = vmatpush1.msra.mxu0 0.0
    %1467 = vmatprep.subr.mxu0 0.0
    %1468 = vmatpush1.msra.mxu0 0.0
    %1469 = vmatprep.subr.mxu0 0.0
    %1470 = vmatpush1.msra.mxu0 0.0
    %1471 = vmatprep.subr.mxu0 0.0
    %1472 = vmatpush1.msra.mxu0 0.0
    %1473 = vmatprep.subr.mxu0 0.0
    %1474 = vmatpush1.msra.mxu0 0.0
    %1475 = vmatprep.subr.mxu0 0.0
    %1476 = vmatpush1.msra.mxu0 0.0
    %1477 = vmatprep.subr.mxu0 0.0
    %1478 = vmatpush1.msra.mxu0 0.0
    %1479 = vmatprep.subr.mxu0 0.0
    %1480 = vmatpush1.msra.mxu0 0.0
    %1481 = vmatprep.subr.mxu0 0.0
    %1482 = vmatpush1.msra.mxu0 0.0
    %1483 = vmatprep.subr.mxu0 0.0
    %1484 = vmatpush1.msra.mxu0 0.0
    %1485 = vmatprep.subr.mxu0 0.0
    %1486 = vmatpush1.msra.mxu0 0.0
    %1487 = vmatprep.subr.mxu0 0.0
    %1488 = vmatpush1.msra.mxu0 0.0
    %1489 = vmatprep.subr.mxu0 0.0
    %1490 = vmatpush1.msra.mxu0 0.0
    %1491 = vmatprep.subr.mxu0 0.0
    %1492 = vmatpush1.msra.mxu0 0.0
    %1493 = vmatprep.mubr.f32.mxu0 0.0
    %1494 = vmatmul.mubr.f32.gmra.mrb[0].mxu0 %v1427
    %v1495 = vpop.f32.mrb[0].mxu0
    %v1496 = vadd.f32 0.0, %v1495
    %v1497 = vpop.f32.mrb[0].mxu0
    %v1498 = vadd.f32 0.0, %v1497
    %1499 = vdwg.mxu0
    %v1500 = vadd.f32 %v1424, %v1496
    %v1501 = vadd.f32 %v1425, %v1498
    %v1502 = vxor.u32 %v1500, 2147483648
    %v1503 = vxor.u32 %v1501, 2147483648
    %v1504 = vmul.f32 %v1502, 1.442695
    %v1505 = vpow.pop %v1504
    %v1506 = vmul.f32 %v1503, 1.442695
    %v1507 = vpow.pop %v1506
    %v1508 = vadd.f32 %v1505, 1.0
    %v1509 = vadd.f32 %v1507, 1.0
    %v1510 = vrcp.pop %v1508
    %v1511 = vmul.f32 1.0, %v1510
    %v1512 = vrcp.pop %v1509
    %v1513 = vmul.f32 1.0, %v1512
    %v1514 = vtanh.pop %v1501
    %v1515 = vmul.f32 %v1511, %v1417
    %1517 = vrot.lane.b32.xlu0 %v1514, 64
    %v1518 = vpop.permute.xlu0 %1517
    %v1520 = vmul.f32 %v1511, %v1518
    %1522 = vrot.lane.b32.xlu0 %v1520, 64
    %v1523 = vpop.permute.xlu0 %1522
    %v1525 = vadd.f32 %v1515, %v1523
    %v1526 = vtanh.pop %v1525
    %1528 = vrot.lane.b32.xlu0 %v1526, 64
    %v1529 = vpop.permute.xlu0 %1528
    %v1531 = vmul.f32 %v1513, %v1529
    %v1532 = vld [vmem:[#allocation2 + $0xc0] sm:$0xff]
    %v1533 = vld [vmem:[#allocation2 + $0xc8] sm:$0xff]
    %v1535 = vsel %vm341, %v1531, 0
    %1537 = vmatprep.subr.mxu0 %v28
    %1538 = vmatpush1.msra.mxu0 %v27
    %1539 = vmatprep.subr.mxu0 %v30
    %1540 = vmatpush1.msra.mxu0 %v29
    %1541 = vmatprep.subr.mxu0 %v32
    %1542 = vmatpush1.msra.mxu0 %v31
    %1543 = vmatprep.subr.mxu0 %v34
    %1544 = vmatpush1.msra.mxu0 %v33
    %1545 = vmatprep.subr.mxu0 %v36
    %1546 = vmatpush1.msra.mxu0 %v35
    %1547 = vmatprep.subr.mxu0 %v38
    %1548 = vmatpush1.msra.mxu0 %v37
    %1549 = vmatprep.subr.mxu0 %v40
    %1550 = vmatpush1.msra.mxu0 %v39
    %1551 = vmatprep.subr.mxu0 %v42
    %1552 = vmatpush1.msra.mxu0 %v41
    %1553 = vmatprep.subr.mxu0 0.0
    %1554 = vmatpush1.msra.mxu0 0.0
    %1555 = vmatprep.subr.mxu0 0.0
    %1556 = vmatpush1.msra.mxu0 0.0
    %1557 = vmatprep.subr.mxu0 0.0
    %1558 = vmatpush1.msra.mxu0 0.0
    %1559 = vmatprep.subr.mxu0 0.0
    %1560 = vmatpush1.msra.mxu0 0.0
    %1561 = vmatprep.subr.mxu0 0.0
    %1562 = vmatpush1.msra.mxu0 0.0
    %1563 = vmatprep.subr.mxu0 0.0
    %1564 = vmatpush1.msra.mxu0 0.0
    %1565 = vmatprep.subr.mxu0 0.0
    %1566 = vmatpush1.msra.mxu0 0.0
    %1567 = vmatprep.subr.mxu0 0.0
    %1568 = vmatpush1.msra.mxu0 0.0
    %1569 = vmatprep.subr.mxu0 0.0
    %1570 = vmatpush1.msra.mxu0 0.0
    %1571 = vmatprep.subr.mxu0 0.0
    %1572 = vmatpush1.msra.mxu0 0.0
    %1573 = vmatprep.subr.mxu0 0.0
    %1574 = vmatpush1.msra.mxu0 0.0
    %1575 = vmatprep.subr.mxu0 0.0
    %1576 = vmatpush1.msra.mxu0 0.0
    %1577 = vmatprep.subr.mxu0 0.0
    %1578 = vmatpush1.msra.mxu0 0.0
    %1579 = vmatprep.subr.mxu0 0.0
    %1580 = vmatpush1.msra.mxu0 0.0
    %1581 = vmatprep.subr.mxu0 0.0
    %1582 = vmatpush1.msra.mxu0 0.0
    %1583 = vmatprep.subr.mxu0 0.0
    %1584 = vmatpush1.msra.mxu0 0.0
    %1585 = vmatprep.subr.mxu0 0.0
    %1586 = vmatpush1.msra.mxu0 0.0
    %1587 = vmatprep.subr.mxu0 0.0
    %1588 = vmatpush1.msra.mxu0 0.0
    %1589 = vmatprep.subr.mxu0 0.0
    %1590 = vmatpush1.msra.mxu0 0.0
    %1591 = vmatprep.subr.mxu0 0.0
    %1592 = vmatpush1.msra.mxu0 0.0
    %1593 = vmatprep.subr.mxu0 0.0
    %1594 = vmatpush1.msra.mxu0 0.0
    %1595 = vmatprep.subr.mxu0 0.0
    %1596 = vmatpush1.msra.mxu0 0.0
    %1597 = vmatprep.subr.mxu0 0.0
    %1598 = vmatpush1.msra.mxu0 0.0
    %1599 = vmatprep.subr.mxu0 0.0
    %1600 = vmatpush1.msra.mxu0 0.0
    %1601 = vmatprep.mubr.f32.mxu0 0.0
    %1602 = vmatmul.mubr.f32.gmra.mrb[0].mxu0 %v1535
    %v1603 = vpop.f32.mrb[0].mxu0
    %v1604 = vadd.f32 0.0, %v1603
    %v1605 = vpop.f32.mrb[0].mxu0
    %v1606 = vadd.f32 0.0, %v1605
    %1607 = vdwg.mxu0
    %v1608 = vadd.f32 %v1532, %v1604
    %v1609 = vadd.f32 %v1533, %v1606
    %v1610 = vxor.u32 %v1608, 2147483648
    %v1611 = vxor.u32 %v1609, 2147483648
    %v1612 = vmul.f32 %v1610, 1.442695
    %v1613 = vpow.pop %v1612
    %v1614 = vmul.f32 %v1611, 1.442695
    %v1615 = vpow.pop %v1614
    %v1616 = vadd.f32 %v1613, 1.0
    %v1617 = vadd.f32 %v1615, 1.0
    %v1618 = vrcp.pop %v1616
    %v1619 = vmul.f32 1.0, %v1618
    %v1620 = vrcp.pop %v1617
    %v1621 = vmul.f32 1.0, %v1620
    %v1622 = vtanh.pop %v1609
    %v1623 = vmul.f32 %v1619, %v1525
    %1625 = vrot.lane.b32.xlu0 %v1622, 64
    %v1626 = vpop.permute.xlu0 %1625
    %v1628 = vmul.f32 %v1619, %v1626
    %1630 = vrot.lane.b32.xlu0 %v1628, 64
    %v1631 = vpop.permute.xlu0 %1630
    %v1633 = vadd.f32 %v1623, %v1631
    %v1634 = vtanh.pop %v1633
    %1636 = vrot.lane.b32.xlu0 %v1634, 64
    %v1637 = vpop.permute.xlu0 %1636
    %v1639 = vmul.f32 %v1621, %v1637
    %v1640 = vld [vmem:[#allocation2 + $0xd0] sm:$0xff]
    %v1641 = vld [vmem:[#allocation2 + $0xd8] sm:$0xff]
    %v1643 = vsel %vm341, %v1639, 0
    %1645 = vmatprep.subr.mxu0 %v28
    %1646 = vmatpush1.msra.mxu0 %v27
    %1647 = vmatprep.subr.mxu0 %v30
    %1648 = vmatpush1.msra.mxu0 %v29
    %1649 = vmatprep.subr.mxu0 %v32
    %1650 = vmatpush1.msra.mxu0 %v31
    %1651 = vmatprep.subr.mxu0 %v34
    %1652 = vmatpush1.msra.mxu0 %v33
    %1653 = vmatprep.subr.mxu0 %v36
    %1654 = vmatpush1.msra.mxu0 %v35
    %1655 = vmatprep.subr.mxu0 %v38
    %1656 = vmatpush1.msra.mxu0 %v37
    %1657 = vmatprep.subr.mxu0 %v40
    %1658 = vmatpush1.msra.mxu0 %v39
    %1659 = vmatprep.subr.mxu0 %v42
    %1660 = vmatpush1.msra.mxu0 %v41
    %1661 = vmatprep.subr.mxu0 0.0
    %1662 = vmatpush1.msra.mxu0 0.0
    %1663 = vmatprep.subr.mxu0 0.0
    %1664 = vmatpush1.msra.mxu0 0.0
    %1665 = vmatprep.subr.mxu0 0.0
    %1666 = vmatpush1.msra.mxu0 0.0
    %1667 = vmatprep.subr.mxu0 0.0
    %1668 = vmatpush1.msra.mxu0 0.0
    %1669 = vmatprep.subr.mxu0 0.0
    %1670 = vmatpush1.msra.mxu0 0.0
    %1671 = vmatprep.subr.mxu0 0.0
    %1672 = vmatpush1.msra.mxu0 0.0
    %1673 = vmatprep.subr.mxu0 0.0
    %1674 = vmatpush1.msra.mxu0 0.0
    %1675 = vmatprep.subr.mxu0 0.0
    %1676 = vmatpush1.msra.mxu0 0.0
    %1677 = vmatprep.subr.mxu0 0.0
    %1678 = vmatpush1.msra.mxu0 0.0
    %1679 = vmatprep.subr.mxu0 0.0
    %1680 = vmatpush1.msra.mxu0 0.0
    %1681 = vmatprep.subr.mxu0 0.0
    %1682 = vmatpush1.msra.mxu0 0.0
    %1683 = vmatprep.subr.mxu0 0.0
    %1684 = vmatpush1.msra.mxu0 0.0
    %1685 = vmatprep.subr.mxu0 0.0
    %1686 = vmatpush1.msra.mxu0 0.0
    %1687 = vmatprep.subr.mxu0 0.0
    %1688 = vmatpush1.msra.mxu0 0.0
    %1689 = vmatprep.subr.mxu0 0.0
    %1690 = vmatpush1.msra.mxu0 0.0
    %1691 = vmatprep.subr.mxu0 0.0
    %1692 = vmatpush1.msra.mxu0 0.0
    %1693 = vmatprep.subr.mxu0 0.0
    %1694 = vmatpush1.msra.mxu0 0.0
    %1695 = vmatprep.subr.mxu0 0.0
    %1696 = vmatpush1.msra.mxu0 0.0
    %1697 = vmatprep.subr.mxu0 0.0
    %1698 = vmatpush1.msra.mxu0 0.0
    %1699 = vmatprep.subr.mxu0 0.0
    %1700 = vmatpush1.msra.mxu0 0.0
    %1701 = vmatprep.subr.mxu0 0.0
    %1702 = vmatpush1.msra.mxu0 0.0
    %1703 = vmatprep.subr.mxu0 0.0
    %1704 = vmatpush1.msra.mxu0 0.0
    %1705 = vmatprep.subr.mxu0 0.0
    %1706 = vmatpush1.msra.mxu0 0.0
    %1707 = vmatprep.subr.mxu0 0.0
    %1708 = vmatpush1.msra.mxu0 0.0
    %1709 = vmatprep.mubr.f32.mxu0 0.0
    %1710 = vmatmul.mubr.f32.gmra.mrb[0].mxu0 %v1643
    %v1711 = vpop.f32.mrb[0].mxu0
    %v1712 = vadd.f32 0.0, %v1711
    %v1713 = vpop.f32.mrb[0].mxu0
    %v1714 = vadd.f32 0.0, %v1713
    %1715 = vdwg.mxu0
    %v1716 = vadd.f32 %v1640, %v1712
    %v1717 = vadd.f32 %v1641, %v1714
    %v1718 = vxor.u32 %v1716, 2147483648
    %v1719 = vxor.u32 %v1717, 2147483648
    %v1720 = vmul.f32 %v1718, 1.442695
    %v1721 = vpow.pop %v1720
    %v1722 = vmul.f32 %v1719, 1.442695
    %v1723 = vpow.pop %v1722
    %v1724 = vadd.f32 %v1721, 1.0
    %v1725 = vadd.f32 %v1723, 1.0
    %v1726 = vrcp.pop %v1724
    %v1727 = vmul.f32 1.0, %v1726
    %v1728 = vrcp.pop %v1725
    %v1729 = vmul.f32 1.0, %v1728
    %v1730 = vtanh.pop %v1717
    %v1731 = vmul.f32 %v1727, %v1633
    %1733 = vrot.lane.b32.xlu0 %v1730, 64
    %v1734 = vpop.permute.xlu0 %1733
    %v1736 = vmul.f32 %v1727, %v1734
    %1738 = vrot.lane.b32.xlu0 %v1736, 64
    %v1739 = vpop.permute.xlu0 %1738
    %v1741 = vadd.f32 %v1731, %v1739
    %v1742 = vtanh.pop %v1741
    %1744 = vrot.lane.b32.xlu0 %v1742, 64
    %v1745 = vpop.permute.xlu0 %1744
    %v1747 = vmul.f32 %v1729, %v1745
    %v1748 = vld [vmem:[#allocation2 + $0xe0] sm:$0xff]
    %v1749 = vld [vmem:[#allocation2 + $0xe8] sm:$0xff]
    %v1751 = vsel %vm341, %v1747, 0
    %1753 = vmatprep.subr.mxu0 %v28
    %1754 = vmatpush1.msra.mxu0 %v27
    %1755 = vmatprep.subr.mxu0 %v30
    %1756 = vmatpush1.msra.mxu0 %v29
    %1757 = vmatprep.subr.mxu0 %v32
    %1758 = vmatpush1.msra.mxu0 %v31
    %1759 = vmatprep.subr.mxu0 %v34
    %1760 = vmatpush1.msra.mxu0 %v33
    %1761 = vmatprep.subr.mxu0 %v36
    %1762 = vmatpush1.msra.mxu0 %v35
    %1763 = vmatprep.subr.mxu0 %v38
    %1764 = vmatpush1.msra.mxu0 %v37
    %1765 = vmatprep.subr.mxu0 %v40
    %1766 = vmatpush1.msra.mxu0 %v39
    %1767 = vmatprep.subr.mxu0 %v42
    %1768 = vmatpush1.msra.mxu0 %v41
    %1769 = vmatprep.subr.mxu0 0.0
    %1770 = vmatpush1.msra.mxu0 0.0
    %1771 = vmatprep.subr.mxu0 0.0
    %1772 = vmatpush1.msra.mxu0 0.0
    %1773 = vmatprep.subr.mxu0 0.0
    %1774 = vmatpush1.msra.mxu0 0.0
    %1775 = vmatprep.subr.mxu0 0.0
    %1776 = vmatpush1.msra.mxu0 0.0
    %1777 = vmatprep.subr.mxu0 0.0
    %1778 = vmatpush1.msra.mxu0 0.0
    %1779 = vmatprep.subr.mxu0 0.0
    %1780 = vmatpush1.msra.mxu0 0.0
    %1781 = vmatprep.subr.mxu0 0.0
    %1782 = vmatpush1.msra.mxu0 0.0
    %1783 = vmatprep.subr.mxu0 0.0
    %1784 = vmatpush1.msra.mxu0 0.0
    %1785 = vmatprep.subr.mxu0 0.0
    %1786 = vmatpush1.msra.mxu0 0.0
    %1787 = vmatprep.subr.mxu0 0.0
    %1788 = vmatpush1.msra.mxu0 0.0
    %1789 = vmatprep.subr.mxu0 0.0
    %1790 = vmatpush1.msra.mxu0 0.0
    %1791 = vmatprep.subr.mxu0 0.0
    %1792 = vmatpush1.msra.mxu0 0.0
    %1793 = vmatprep.subr.mxu0 0.0
    %1794 = vmatpush1.msra.mxu0 0.0
    %1795 = vmatprep.subr.mxu0 0.0
    %1796 = vmatpush1.msra.mxu0 0.0
    %1797 = vmatprep.subr.mxu0 0.0
    %1798 = vmatpush1.msra.mxu0 0.0
    %1799 = vmatprep.subr.mxu0 0.0
    %1800 = vmatpush1.msra.mxu0 0.0
    %1801 = vmatprep.subr.mxu0 0.0
    %1802 = vmatpush1.msra.mxu0 0.0
    %1803 = vmatprep.subr.mxu0 0.0
    %1804 = vmatpush1.msra.mxu0 0.0
    %1805 = vmatprep.subr.mxu0 0.0
    %1806 = vmatpush1.msra.mxu0 0.0
    %1807 = vmatprep.subr.mxu0 0.0
    %1808 = vmatpush1.msra.mxu0 0.0
    %1809 = vmatprep.subr.mxu0 0.0
    %1810 = vmatpush1.msra.mxu0 0.0
    %1811 = vmatprep.subr.mxu0 0.0
    %1812 = vmatpush1.msra.mxu0 0.0
    %1813 = vmatprep.subr.mxu0 0.0
    %1814 = vmatpush1.msra.mxu0 0.0
    %1815 = vmatprep.subr.mxu0 0.0
    %1816 = vmatpush1.msra.mxu0 0.0
    %1817 = vmatprep.mubr.f32.mxu0 0.0
    %1818 = vmatmul.mubr.f32.gmra.mrb[0].mxu0 %v1751
    %v1819 = vpop.f32.mrb[0].mxu0
    %v1820 = vadd.f32 0.0, %v1819
    %v1821 = vpop.f32.mrb[0].mxu0
    %v1822 = vadd.f32 0.0, %v1821
    %1823 = vdwg.mxu0
    %v1824 = vadd.f32 %v1748, %v1820
    %v1825 = vadd.f32 %v1749, %v1822
    %v1826 = vxor.u32 %v1824, 2147483648
    %v1827 = vxor.u32 %v1825, 2147483648
    %v1828 = vmul.f32 %v1826, 1.442695
    %v1829 = vpow.pop %v1828
    %v1830 = vmul.f32 %v1827, 1.442695
    %v1831 = vpow.pop %v1830
    %v1832 = vadd.f32 %v1829, 1.0
    %v1833 = vadd.f32 %v1831, 1.0
    %v1834 = vrcp.pop %v1832
    %v1835 = vmul.f32 1.0, %v1834
    %v1836 = vrcp.pop %v1833
    %v1837 = vmul.f32 1.0, %v1836
    %v1838 = vtanh.pop %v1825
    %v1839 = vmul.f32 %v1835, %v1741
    %1841 = vrot.lane.b32.xlu0 %v1838, 64
    %v1842 = vpop.permute.xlu0 %1841
    %v1844 = vmul.f32 %v1835, %v1842
    %1846 = vrot.lane.b32.xlu0 %v1844, 64
    %v1847 = vpop.permute.xlu0 %1846
    %v1849 = vadd.f32 %v1839, %v1847
    %v1850 = vtanh.pop %v1849
    %1852 = vrot.lane.b32.xlu0 %v1850, 64
    %v1853 = vpop.permute.xlu0 %1852
    %v1855 = vmul.f32 %v1837, %v1853
    %v1856 = vld [vmem:[#allocation2 + $0xf0] sm:$0xff]
    %v1857 = vld [vmem:[#allocation2 + $0xf8] sm:$0xff]
    %v1859 = vsel %vm341, %v1855, 0
    %1861 = vmatprep.subr.mxu0 %v28
    %1862 = vmatpush1.msra.mxu0 %v27
    %1863 = vmatprep.subr.mxu0 %v30
    %1864 = vmatpush1.msra.mxu0 %v29
    %1865 = vmatprep.subr.mxu0 %v32
    %1866 = vmatpush1.msra.mxu0 %v31
    %1867 = vmatprep.subr.mxu0 %v34
    %1868 = vmatpush1.msra.mxu0 %v33
    %1869 = vmatprep.subr.mxu0 %v36
    %1870 = vmatpush1.msra.mxu0 %v35
    %1871 = vmatprep.subr.mxu0 %v38
    %1872 = vmatpush1.msra.mxu0 %v37
    %1873 = vmatprep.subr.mxu0 %v40
    %1874 = vmatpush1.msra.mxu0 %v39
    %1875 = vmatprep.subr.mxu0 %v42
    %1876 = vmatpush1.msra.mxu0 %v41
    %1877 = vmatprep.subr.mxu0 0.0
    %1878 = vmatpush1.msra.mxu0 0.0
    %1879 = vmatprep.subr.mxu0 0.0
    %1880 = vmatpush1.msra.mxu0 0.0
    %1881 = vmatprep.subr.mxu0 0.0
    %1882 = vmatpush1.msra.mxu0 0.0
    %1883 = vmatprep.subr.mxu0 0.0
    %1884 = vmatpush1.msra.mxu0 0.0
    %1885 = vmatprep.subr.mxu0 0.0
    %1886 = vmatpush1.msra.mxu0 0.0
    %1887 = vmatprep.subr.mxu0 0.0
    %1888 = vmatpush1.msra.mxu0 0.0
    %1889 = vmatprep.subr.mxu0 0.0
    %1890 = vmatpush1.msra.mxu0 0.0
    %1891 = vmatprep.subr.mxu0 0.0
    %1892 = vmatpush1.msra.mxu0 0.0
    %1893 = vmatprep.subr.mxu0 0.0
    %1894 = vmatpush1.msra.mxu0 0.0
    %1895 = vmatprep.subr.mxu0 0.0
    %1896 = vmatpush1.msra.mxu0 0.0
    %1897 = vmatprep.subr.mxu0 0.0
    %1898 = vmatpush1.msra.mxu0 0.0
    %1899 = vmatprep.subr.mxu0 0.0
    %1900 = vmatpush1.msra.mxu0 0.0
    %1901 = vmatprep.subr.mxu0 0.0
    %1902 = vmatpush1.msra.mxu0 0.0
    %1903 = vmatprep.subr.mxu0 0.0
    %1904 = vmatpush1.msra.mxu0 0.0
    %1905 = vmatprep.subr.mxu0 0.0
    %1906 = vmatpush1.msra.mxu0 0.0
    %1907 = vmatprep.subr.mxu0 0.0
    %1908 = vmatpush1.msra.mxu0 0.0
    %1909 = vmatprep.subr.mxu0 0.0
    %1910 = vmatpush1.msra.mxu0 0.0
    %1911 = vmatprep.subr.mxu0 0.0
    %1912 = vmatpush1.msra.mxu0 0.0
    %1913 = vmatprep.subr.mxu0 0.0
    %1914 = vmatpush1.msra.mxu0 0.0
    %1915 = vmatprep.subr.mxu0 0.0
    %1916 = vmatpush1.msra.mxu0 0.0
    %1917 = vmatprep.subr.mxu0 0.0
    %1918 = vmatpush1.msra.mxu0 0.0
    %1919 = vmatprep.subr.mxu0 0.0
    %1920 = vmatpush1.msra.mxu0 0.0
    %1921 = vmatprep.subr.mxu0 0.0
    %1922 = vmatpush1.msra.mxu0 0.0
    %1923 = vmatprep.subr.mxu0 0.0
    %1924 = vmatpush1.msra.mxu0 0.0
    %1925 = vmatprep.mubr.f32.mxu0 0.0
    %1926 = vmatmul.mubr.f32.gmra.mrb[0].mxu0 %v1859
    %v1927 = vpop.f32.mrb[0].mxu0
    %v1928 = vadd.f32 0.0, %v1927
    %v1929 = vpop.f32.mrb[0].mxu0
    %v1930 = vadd.f32 0.0, %v1929
    %1931 = vdwg.mxu0
    %v1932 = vadd.f32 %v1856, %v1928
    %v1933 = vadd.f32 %v1857, %v1930
    %v1934 = vxor.u32 %v1932, 2147483648
    %v1935 = vxor.u32 %v1933, 2147483648
    %v1936 = vmul.f32 %v1934, 1.442695
    %v1937 = vpow.pop %v1936
    %v1938 = vmul.f32 %v1935, 1.442695
    %v1939 = vpow.pop %v1938
    %v1940 = vadd.f32 %v1937, 1.0
    %v1941 = vadd.f32 %v1939, 1.0
    %v1942 = vrcp.pop %v1940
    %v1943 = vmul.f32 1.0, %v1942
    %v1944 = vrcp.pop %v1941
    %v1945 = vmul.f32 1.0, %v1944
    %v1946 = vtanh.pop %v1933
    %v1947 = vmul.f32 %v1943, %v1849
    %1949 = vrot.lane.b32.xlu0 %v1946, 64
    %v1950 = vpop.permute.xlu0 %1949
    %v1952 = vmul.f32 %v1943, %v1950
    %1954 = vrot.lane.b32.xlu0 %v1952, 64
    %v1955 = vpop.permute.xlu0 %1954
    %v1957 = vadd.f32 %v1947, %v1955
    %v1958 = vtanh.pop %v1957
    %1960 = vrot.lane.b32.xlu0 %v1958, 64
    %v1961 = vpop.permute.xlu0 %1960
    %v1963 = vmul.f32 %v1945, %v1961
    %v1964 = vld [vmem:[#allocation2 + $0x100] sm:$0xff]
    %v1965 = vld [vmem:[#allocation2 + $0x108] sm:$0xff]
    %v1967 = vsel %vm341, %v1963, 0
    %1969 = vmatprep.subr.mxu0 %v28
    %1970 = vmatpush1.msra.mxu0 %v27
    %1971 = vmatprep.subr.mxu0 %v30
    %1972 = vmatpush1.msra.mxu0 %v29
    %1973 = vmatprep.subr.mxu0 %v32
    %1974 = vmatpush1.msra.mxu0 %v31
    %1975 = vmatprep.subr.mxu0 %v34
    %1976 = vmatpush1.msra.mxu0 %v33
    %1977 = vmatprep.subr.mxu0 %v36
    %1978 = vmatpush1.msra.mxu0 %v35
    %1979 = vmatprep.subr.mxu0 %v38
    %1980 = vmatpush1.msra.mxu0 %v37
    %1981 = vmatprep.subr.mxu0 %v40
    %1982 = vmatpush1.msra.mxu0 %v39
    %1983 = vmatprep.subr.mxu0 %v42
    %1984 = vmatpush1.msra.mxu0 %v41
    %1985 = vmatprep.subr.mxu0 0.0
    %1986 = vmatpush1.msra.mxu0 0.0
    %1987 = vmatprep.subr.mxu0 0.0
    %1988 = vmatpush1.msra.mxu0 0.0
    %1989 = vmatprep.subr.mxu0 0.0
    %1990 = vmatpush1.msra.mxu0 0.0
    %1991 = vmatprep.subr.mxu0 0.0
    %1992 = vmatpush1.msra.mxu0 0.0
    %1993 = vmatprep.subr.mxu0 0.0
    %1994 = vmatpush1.msra.mxu0 0.0
    %1995 = vmatprep.subr.mxu0 0.0
    %1996 = vmatpush1.msra.mxu0 0.0
    %1997 = vmatprep.subr.mxu0 0.0
    %1998 = vmatpush1.msra.mxu0 0.0
    %1999 = vmatprep.subr.mxu0 0.0
    %2000 = vmatpush1.msra.mxu0 0.0
    %2001 = vmatprep.subr.mxu0 0.0
    %2002 = vmatpush1.msra.mxu0 0.0
    %2003 = vmatprep.subr.mxu0 0.0
    %2004 = vmatpush1.msra.mxu0 0.0
    %2005 = vmatprep.subr.mxu0 0.0
    %2006 = vmatpush1.msra.mxu0 0.0
    %2007 = vmatprep.subr.mxu0 0.0
    %2008 = vmatpush1.msra.mxu0 0.0
    %2009 = vmatprep.subr.mxu0 0.0
    %2010 = vmatpush1.msra.mxu0 0.0
    %2011 = vmatprep.subr.mxu0 0.0
    %2012 = vmatpush1.msra.mxu0 0.0
    %2013 = vmatprep.subr.mxu0 0.0
    %2014 = vmatpush1.msra.mxu0 0.0
    %2015 = vmatprep.subr.mxu0 0.0
    %2016 = vmatpush1.msra.mxu0 0.0
    %2017 = vmatprep.subr.mxu0 0.0
    %2018 = vmatpush1.msra.mxu0 0.0
    %2019 = vmatprep.subr.mxu0 0.0
    %2020 = vmatpush1.msra.mxu0 0.0
    %2021 = vmatprep.subr.mxu0 0.0
    %2022 = vmatpush1.msra.mxu0 0.0
    %2023 = vmatprep.subr.mxu0 0.0
    %2024 = vmatpush1.msra.mxu0 0.0
    %2025 = vmatprep.subr.mxu0 0.0
    %2026 = vmatpush1.msra.mxu0 0.0
    %2027 = vmatprep.subr.mxu0 0.0
    %2028 = vmatpush1.msra.mxu0 0.0
    %2029 = vmatprep.subr.mxu0 0.0
    %2030 = vmatpush1.msra.mxu0 0.0
    %2031 = vmatprep.subr.mxu0 0.0
    %2032 = vmatpush1.msra.mxu0 0.0
    %2033 = vmatprep.mubr.f32.mxu0 0.0
    %2034 = vmatmul.mubr.f32.gmra.mrb[0].mxu0 %v1967
    %v2035 = vpop.f32.mrb[0].mxu0
    %v2036 = vadd.f32 0.0, %v2035
    %v2037 = vpop.f32.mrb[0].mxu0
    %v2038 = vadd.f32 0.0, %v2037
    %2039 = vdwg.mxu0
    %v2040 = vadd.f32 %v1964, %v2036
    %v2041 = vadd.f32 %v1965, %v2038
    %v2042 = vxor.u32 %v2040, 2147483648
    %v2043 = vxor.u32 %v2041, 2147483648
    %v2044 = vmul.f32 %v2042, 1.442695
    %v2045 = vpow.pop %v2044
    %v2046 = vmul.f32 %v2043, 1.442695
    %v2047 = vpow.pop %v2046
    %v2048 = vadd.f32 %v2045, 1.0
    %v2049 = vadd.f32 %v2047, 1.0
    %v2050 = vrcp.pop %v2048
    %v2051 = vmul.f32 1.0, %v2050
    %v2052 = vrcp.pop %v2049
    %v2053 = vmul.f32 1.0, %v2052
    %v2054 = vtanh.pop %v2041
    %v2055 = vmul.f32 %v2051, %v1957
    %2057 = vrot.lane.b32.xlu0 %v2054, 64
    %v2058 = vpop.permute.xlu0 %2057
    %v2060 = vmul.f32 %v2051, %v2058
    %2062 = vrot.lane.b32.xlu0 %v2060, 64
    %v2063 = vpop.permute.xlu0 %2062
    %v2065 = vadd.f32 %v2055, %v2063
    %v2066 = vtanh.pop %v2065
    %2068 = vrot.lane.b32.xlu0 %v2066, 64
    %v2069 = vpop.permute.xlu0 %2068
    %v2071 = vmul.f32 %v2053, %v2069
    %v2072 = vld [vmem:[#allocation3 + $0x90] ss:$0 sm:$0xff]
    %2074 = vrot.lane.b32.xlu0 %v2072, 32
    %v2075 = vpop.permute.xlu0 %2074
    %v2077 = vmul.f32 %v2071, %v2075
    %2079 = vrot.lane.b32.xlu0 %v2077, 96
    %v2080 = vpop.permute.xlu0 %2079
    %vm2082 = vcmask 261120
    %v2083 = vsel %vm2082, %v2080, 0.0
    %2084 = vadd.xlane.f32.xlu0 %v2083
    %v2085 = vpop.xlane.xlu0 %2084
    %v2086 = vadd.f32 %v2085, %v2072
    %2088 = vrot.lane.b32.xlu0 %v2086, 96
    %v2089 = vpop.permute.xlu0 %2088
    %vm2091 = vcmask 7168
    %2092 = vst.msk [vmem:[%s2] sm:$0xff] %vm2091, %v2089
    // Predicated region
    $region14: #{tpu_custom_call.1} parent=1 // pred_check
      _
    $region15: #{tpu_custom_call.1} parent=1 // pred_check_branch
      %2094 = sbr.rel (0) target = $region17
    $region16: #{tpu_custom_call.1} parent=1 // pred_region
      _
    $region17: #{tpu_custom_call.1} parent=1 // pred_fallthru
      _
    // Predicated region
    $region18: #{tpu_custom_call.1} parent=1 // pred_check
      _
    $region19: #{tpu_custom_call.1} parent=1 // pred_check_branch
      %2096 = sbr.rel (0) target = $region21
    $region20: #{tpu_custom_call.1} parent=1 // pred_region
      _
    $region21: #{tpu_custom_call.1} parent=1 // pred_fallthru
      _
    %2097 = vsyncpa [#allocation4], 1

</llo_original>
